<compile_context>
chip_gen: v7x
topology: tpu7x:2x2x1
jax: 0.10.0
libtpu: 0.0.40
codegen_flags: <defaults>
</compile_context>

<pallas_src>
import functools

import jax
import jax.numpy as jnp
from jax.experimental import pallas as pl
from jax.experimental.pallas import tpu as pltpu


# ----------------------------------------------------------------------------
# Fused encoder kernel
# ----------------------------------------------------------------------------
def _encoder_kernel(x_ref, m1_ref, b1_ref, m2_ref, b2_ref, wfc_ref, bfc_ref,
                    mu_ref, logvar_ref, h1_ref, h2_ref, *, batch, c, latent):
    K = 4  # conv kernel size (stride 2, padding 1)

    # conv1 output lives in a zero-padded slab per image:
    #   h1_ref rows = (b, padded h in [0,16)),  cols = (padded w in [0,16)) * c + ci
    # The zero ring reproduces conv2's padding=1.
    h1_ref[...] = jnp.zeros_like(h1_ref)

    # ---------------- conv1 + ReLU  (28x28x1 -> 14x14xc) --------------------
    for b in range(batch):
        acc = jnp.zeros((14, 14 * c), jnp.float32)
        for kh in range(K):
            # rows 2*ho + kh of the padded 32x32 input slab of image b
            rows = x_ref[pl.ds(b * 32 + kh, 14, 2), :]            # (14, 32) f32
            acc += jnp.dot(rows.astype(jnp.bfloat16), m1_ref[kh],
                           preferred_element_type=jnp.float32)    # (14, 14*c)
        h1b = jnp.maximum(acc + b1_ref[...], 0.0)                 # bias+ReLU in f32
        # store into the padded slab: padded rows 1..14, padded width blocks 1..14
        h1_ref[pl.ds(b * 16 + 1, 14), pl.ds(c, 14 * c)] = h1b

    # ---------------- conv2 + ReLU  (14x14xc -> 7x7x2c) ---------------------
    for b in range(batch):
        acc = jnp.zeros((7, 7 * 2 * c), jnp.float32)
        for kh in range(K):
            rows = h1_ref[pl.ds(b * 16 + kh, 7, 2), :]            # (7, 16*c) f32
            acc += jnp.dot(rows.astype(jnp.bfloat16), m2_ref[kh],
                           preferred_element_type=jnp.float32)    # (7, 7*2c)
        h2b = jnp.maximum(acc + b2_ref[...], 0.0)
        h2_ref[pl.ds(b * 7, 7), :] = h2b                          # rows = (b, ho2)

    # ---------------- fc_mu & fc_logvar (fused, batched over B) -------------
    row_blk = 7 * 2 * c                                           # features per ho2 row
    out = bfc_ref[...] + jnp.zeros((batch, 2 * latent), jnp.float32)
    for ho in range(7):
        rows = h2_ref[pl.ds(ho, batch, 7), :]                     # (B, 7*2c)
        w = wfc_ref[pl.ds(ho * row_blk, row_blk), :]              # (7*2c, 2*latent)
        out += jnp.dot(rows.astype(jnp.bfloat16), w,
                       preferred_element_type=jnp.float32)
    mu_ref[...] = out[:, :latent]
    logvar_ref[...] = out[:, latent:]


# ----------------------------------------------------------------------------
# Trace-time weight preprocessing (tiny, runs in XLA on the params)
# ----------------------------------------------------------------------------
def _conv_as_matmul_weights(w_oikk, w_out, w_pad):
    """Fold the (kw, cin, cout) contraction of a stride-2, k=4 conv into dense
    matrices, one per kernel row kh.

    Returns M of shape (4, w_pad*cin, w_out*cout) with
      M[kh, w*cin + ci, wo*cout + co] = w_oikk[co, ci, kh, w - 2*wo]
    when 0 <= w - 2*wo < 4, else 0.   (w is the zero-padded width coordinate.)
    """
    cout, cin, K, _ = w_oikk.shape
    w_idx = jnp.arange(w_pad)[:, None]                 # (w_pad, 1)
    wo_idx = jnp.arange(w_out)[None, :]                # (1, w_out)
    kw = w_idx - 2 * wo_idx                            # (w_pad, w_out)
    valid = (kw >= 0) & (kw < K)
    kw_c = jnp.clip(kw, 0, K - 1)
    g = w_oikk[:, :, :, kw_c]                          # (cout, cin, K, w_pad, w_out)
    g = jnp.where(valid[None, None, None, :, :], g, 0.0)
    m = jnp.transpose(g, (2, 3, 1, 4, 0))              # (kh, w_pad, cin, w_out, cout)
    return m.reshape(K, w_pad * cin, w_out * cout)


def _fc_rows_nchw_to_nhwc(w, c2, h, wd):
    """Permute FC weight rows from NCHW-flat order (co*h*w + ho*w + wo), which is
    what PyTorch's x.view(B,-1) produces, to the kernel's NHWC-flat order
    (ho*w*c2 + wo*c2 + co)."""
    feat, out = w.shape
    w4 = w.reshape(c2, h, wd, out)
    return jnp.transpose(w4, (1, 2, 0, 3)).reshape(feat, out)


# ----------------------------------------------------------------------------
# Encoder forward
# ----------------------------------------------------------------------------
def encoder_forward(x_nchw, params):
    B, cin, H, W = x_nchw.shape
    assert cin == 1 and H == 28 and W == 28, "Encoder expects (B, 1, 28, 28) input"
    c = params["w1"].shape[0]
    latent = params["w_mu"].shape[1]

    # Padded input slabs: (B, 32, 32) with the image at [1:29, 1:29].  The ring
    # of zeros reproduces Conv2d's padding=1; rows/cols 30..31 are never read.
    x = x_nchw.astype(jnp.float32).reshape(B, 28, 28)
    x2d = jnp.pad(x, ((0, 0), (1, 3), (1, 3))).reshape(B * 32, 32)

    # Conv weights folded into per-kh matmul matrices (bf16 for the MXU).
    m1 = _conv_as_matmul_weights(params["w1"].astype(jnp.float32), 14, 32).astype(jnp.bfloat16)
    m2 = _conv_as_matmul_weights(params["w2"].astype(jnp.float32), 7, 16).astype(jnp.bfloat16)
    b1row = jnp.tile(params["b1"].astype(jnp.float32), 14).reshape(1, 14 * c)
    b2row = jnp.tile(params["b2"].astype(jnp.float32), 7).reshape(1, 7 * 2 * c)

    # fc_mu / fc_logvar fused into one (feat, 2*latent) matrix whose rows are
    # permuted to consume the NHWC-flattened conv2 output directly.
    wfc = jnp.concatenate(
        [_fc_rows_nchw_to_nhwc(params["w_mu"].astype(jnp.float32), 2 * c, 7, 7),
         _fc_rows_nchw_to_nhwc(params["w_logvar"].astype(jnp.float32), 2 * c, 7, 7)],
        axis=1).astype(jnp.bfloat16)
    bfcrow = jnp.concatenate(
        [params["b_mu"], params["b_logvar"]]).astype(jnp.float32).reshape(1, 2 * latent)

    vmem = pltpu.MemorySpace.VMEM
    mu, logvar = pl.pallas_call(
        functools.partial(_encoder_kernel, batch=B, c=c, latent=latent),
        out_shape=(jax.ShapeDtypeStruct((B, latent), jnp.float32),
                   jax.ShapeDtypeStruct((B, latent), jnp.float32)),
        in_specs=[pl.BlockSpec(memory_space=vmem)] * 7,
        out_specs=(pl.BlockSpec(memory_space=vmem),
                   pl.BlockSpec(memory_space=vmem)),
        scratch_shapes=[
            pltpu.VMEM((B * 16, 16 * c), jnp.float32),    # padded conv1 output
            pltpu.VMEM((B * 7, 7 * 2 * c), jnp.float32),  # conv2 output, rows=(b,ho2)
        ],
    )(x2d, m1, b1row, m2, b2row, wfc, bfcrow)
    return mu, logvar


def init_params(key, capacity, latent_dims):
    c = capacity
    feat = c * 2 * 7 * 7
    ks = jax.random.split(key, 8)
    scale = 0.05
    return {
        # Conv weights kept in PyTorch layout (Cout, Cin, kh, kw).
        "w1": scale * jax.random.normal(ks[0], (c, 1, 4, 4), jnp.float32),
        "b1": scale * jax.random.normal(ks[1], (c,), jnp.float32),
        "w2": scale * jax.random.normal(ks[2], (2 * c, c, 4, 4), jnp.float32),
        "b2": scale * jax.random.normal(ks[3], (2 * c,), jnp.float32),
        # FC weights stored as (in, out) with rows in PyTorch's NCHW-flat order.
        "w_mu": scale * jax.random.normal(ks[4], (feat, latent_dims), jnp.float32),
        "b_mu": scale * jax.random.normal(ks[5], (latent_dims,), jnp.float32),
        "w_logvar": scale * jax.random.normal(ks[6], (feat, latent_dims), jnp.float32),
        "b_logvar": scale * jax.random.normal(ks[7], (latent_dims,), jnp.float32),
    }


if __name__ == "__main__":
    capacity = 4       # c
    latent_dims = 8
    B = 2

    key = jax.random.PRNGKey(0)
    k_params, k_x = jax.random.split(key)
    params = init_params(k_params, capacity, latent_dims)

    # Input must be 28x28 so that after two stride-2 convs the spatial size is
    # 7x7, matching fc in_features = c*2*7*7.
    x = jax.random.normal(k_x, (B, 1, 28, 28), jnp.float32)   # NCHW, like PyTorch

    mu, logvar = jax.jit(encoder_forward)(x, params)
    jax.block_until_ready((mu, logvar))

    assert mu.shape == (B, latent_dims) and logvar.shape == (B, latent_dims)
    assert mu.dtype == jnp.float32 and logvar.dtype == jnp.float32
    print("KERNEL_OK")
</pallas_src>

<mosaic_0001>
module attributes {stable_mosaic.version = 11 : i64} {
  func.func @_encoder_kernel(%arg0: memref<64x32xf32, #tpu.memory_space<vmem>>, %arg1: memref<4x32x56xbf16, #tpu.memory_space<vmem>>, %arg2: memref<1x56xf32, #tpu.memory_space<vmem>>, %arg3: memref<4x64x56xbf16, #tpu.memory_space<vmem>>, %arg4: memref<1x56xf32, #tpu.memory_space<vmem>>, %arg5: memref<392x16xbf16, #tpu.memory_space<vmem>>, %arg6: memref<1x16xf32, #tpu.memory_space<vmem>>, %arg7: memref<2x8xf32, #tpu.memory_space<vmem>>, %arg8: memref<2x8xf32, #tpu.memory_space<vmem>>, %arg9: memref<32x64xf32, #tpu.memory_space<vmem>>, %arg10: memref<14x56xf32, #tpu.memory_space<vmem>>) attributes {dimension_semantics = [], scalar_prefetch = 0 : i64, scratch_operands = 2 : i64, tpu.core_type = #tpu.core_type<tc>} {
    %cst = arith.constant 0.000000e+00 : f32
    %0 = vector.broadcast %cst : f32 to vector<32x64xf32>
    %c0 = arith.constant 0 : index
    %c0_0 = arith.constant 0 : index
    %1 = vector.load %arg9[%c0, %c0_0] : memref<32x64xf32, #tpu.memory_space<vmem>>, vector<32x64xf32>
    tpu.vector_store %arg9[%c0, %c0_0], %0 {strides = array<i32>} : memref<32x64xf32, #tpu.memory_space<vmem>>, vector<32x64xf32>,
    %cst_1 = arith.constant 0.000000e+00 : f32
    %2 = vector.broadcast %cst_1 : f32 to vector<14x56xf32>
    %c0_2 = arith.constant 0 : index
    %c0_3 = arith.constant 0 : index
    %3 = tpu.strided_load %arg0[%c0_2, %c0_3] {strides = array<i32: 2, 1>} : memref<64x32xf32, #tpu.memory_space<vmem>>, vector<14x32xf32>
    %4 = arith.truncf %3 : vector<14x32xf32> to vector<14x32xbf16>
    %c0_4 = arith.constant 0 : index
    %c0_5 = arith.constant 0 : index
    %c0_6 = arith.constant 0 : index
    %5 = vector.load %arg1[%c0_4, %c0_5, %c0_6] : memref<4x32x56xbf16, #tpu.memory_space<vmem>>, vector<1x32x56xbf16>
    %6 = vector.shape_cast %5 : vector<1x32x56xbf16> to vector<32x56xbf16>
    %cst_7 = arith.constant dense<0.000000e+00> : vector<14x56xf32>
    %7 = tpu.matmul %4, %6, %cst_7 {dimension_numbers = #tpu.dot_dimension_numbers<[1], [0], [0], [1], [0, 0, 1, 1], [], []>} : vector<14x32xbf16>, vector<32x56xbf16>, vector<14x56xf32> -> vector<14x56xf32>
    %8 = arith.addf %2, %7 : vector<14x56xf32>
    %c1 = arith.constant 1 : index
    %c0_8 = arith.constant 0 : index
    %9 = tpu.strided_load %arg0[%c1, %c0_8] {strides = array<i32: 2, 1>} : memref<64x32xf32, #tpu.memory_space<vmem>>, vector<14x32xf32>
    %10 = arith.truncf %9 : vector<14x32xf32> to vector<14x32xbf16>
    %c1_9 = arith.constant 1 : index
    %c0_10 = arith.constant 0 : index
    %c0_11 = arith.constant 0 : index
    %11 = vector.load %arg1[%c1_9, %c0_10, %c0_11] : memref<4x32x56xbf16, #tpu.memory_space<vmem>>, vector<1x32x56xbf16>
    %12 = vector.shape_cast %11 : vector<1x32x56xbf16> to vector<32x56xbf16>
    %cst_12 = arith.constant dense<0.000000e+00> : vector<14x56xf32>
    %13 = tpu.matmul %10, %12, %cst_12 {dimension_numbers = #tpu.dot_dimension_numbers<[1], [0], [0], [1], [0, 0, 1, 1], [], []>} : vector<14x32xbf16>, vector<32x56xbf16>, vector<14x56xf32> -> vector<14x56xf32>
    %14 = arith.addf %8, %13 : vector<14x56xf32>
    %c2 = arith.constant 2 : index
    %c0_13 = arith.constant 0 : index
    %15 = tpu.strided_load %arg0[%c2, %c0_13] {strides = array<i32: 2, 1>} : memref<64x32xf32, #tpu.memory_space<vmem>>, vector<14x32xf32>
    %16 = arith.truncf %15 : vector<14x32xf32> to vector<14x32xbf16>
    %c2_14 = arith.constant 2 : index
    %c0_15 = arith.constant 0 : index
    %c0_16 = arith.constant 0 : index
    %17 = vector.load %arg1[%c2_14, %c0_15, %c0_16] : memref<4x32x56xbf16, #tpu.memory_space<vmem>>, vector<1x32x56xbf16>
    %18 = vector.shape_cast %17 : vector<1x32x56xbf16> to vector<32x56xbf16>
    %cst_17 = arith.constant dense<0.000000e+00> : vector<14x56xf32>
    %19 = tpu.matmul %16, %18, %cst_17 {dimension_numbers = #tpu.dot_dimension_numbers<[1], [0], [0], [1], [0, 0, 1, 1], [], []>} : vector<14x32xbf16>, vector<32x56xbf16>, vector<14x56xf32> -> vector<14x56xf32>
    %20 = arith.addf %14, %19 : vector<14x56xf32>
    %c3 = arith.constant 3 : index
    %c0_18 = arith.constant 0 : index
    %21 = tpu.strided_load %arg0[%c3, %c0_18] {strides = array<i32: 2, 1>} : memref<64x32xf32, #tpu.memory_space<vmem>>, vector<14x32xf32>
    %22 = arith.truncf %21 : vector<14x32xf32> to vector<14x32xbf16>
    %c3_19 = arith.constant 3 : index
    %c0_20 = arith.constant 0 : index
    %c0_21 = arith.constant 0 : index
    %23 = vector.load %arg1[%c3_19, %c0_20, %c0_21] : memref<4x32x56xbf16, #tpu.memory_space<vmem>>, vector<1x32x56xbf16>
    %24 = vector.shape_cast %23 : vector<1x32x56xbf16> to vector<32x56xbf16>
    %cst_22 = arith.constant dense<0.000000e+00> : vector<14x56xf32>
    %25 = tpu.matmul %22, %24, %cst_22 {dimension_numbers = #tpu.dot_dimension_numbers<[1], [0], [0], [1], [0, 0, 1, 1], [], []>} : vector<14x32xbf16>, vector<32x56xbf16>, vector<14x56xf32> -> vector<14x56xf32>
    %26 = arith.addf %20, %25 : vector<14x56xf32>
    %c0_23 = arith.constant 0 : index
    %c0_24 = arith.constant 0 : index
    %27 = vector.load %arg2[%c0_23, %c0_24] : memref<1x56xf32, #tpu.memory_space<vmem>>, vector<1x56xf32>
    %28 = vector.broadcast %27 : vector<1x56xf32> to vector<14x56xf32>
    %29 = arith.addf %26, %28 : vector<14x56xf32>
    %cst_25 = arith.constant 0.000000e+00 : f32
    %30 = vector.broadcast %cst_25 : f32 to vector<14x56xf32>
    %31 = arith.maximumf %29, %30 : vector<14x56xf32>
    %c1_26 = arith.constant 1 : index
    %c4 = arith.constant 4 : index
    %32 = vector.load %arg9[%c1_26, %c4] : memref<32x64xf32, #tpu.memory_space<vmem>>, vector<14x56xf32>
    tpu.vector_store %arg9[%c1_26, %c4], %31 {strides = array<i32>} : memref<32x64xf32, #tpu.memory_space<vmem>>, vector<14x56xf32>,
    %cst_27 = arith.constant 0.000000e+00 : f32
    %33 = vector.broadcast %cst_27 : f32 to vector<14x56xf32>
    %c32 = arith.constant 32 : index
    %c0_28 = arith.constant 0 : index
    %34 = tpu.strided_load %arg0[%c32, %c0_28] {strides = array<i32: 2, 1>} : memref<64x32xf32, #tpu.memory_space<vmem>>, vector<14x32xf32>
    %35 = arith.truncf %34 : vector<14x32xf32> to vector<14x32xbf16>
    %c0_29 = arith.constant 0 : index
    %c0_30 = arith.constant 0 : index
    %c0_31 = arith.constant 0 : index
    %36 = vector.load %arg1[%c0_29, %c0_30, %c0_31] : memref<4x32x56xbf16, #tpu.memory_space<vmem>>, vector<1x32x56xbf16>
    %37 = vector.shape_cast %36 : vector<1x32x56xbf16> to vector<32x56xbf16>
    %cst_32 = arith.constant dense<0.000000e+00> : vector<14x56xf32>
    %38 = tpu.matmul %35, %37, %cst_32 {dimension_numbers = #tpu.dot_dimension_numbers<[1], [0], [0], [1], [0, 0, 1, 1], [], []>} : vector<14x32xbf16>, vector<32x56xbf16>, vector<14x56xf32> -> vector<14x56xf32>
    %39 = arith.addf %33, %38 : vector<14x56xf32>
    %c33 = arith.constant 33 : index
    %c0_33 = arith.constant 0 : index
    %40 = tpu.strided_load %arg0[%c33, %c0_33] {strides = array<i32: 2, 1>} : memref<64x32xf32, #tpu.memory_space<vmem>>, vector<14x32xf32>
    %41 = arith.truncf %40 : vector<14x32xf32> to vector<14x32xbf16>
    %c1_34 = arith.constant 1 : index
    %c0_35 = arith.constant 0 : index
    %c0_36 = arith.constant 0 : index
    %42 = vector.load %arg1[%c1_34, %c0_35, %c0_36] : memref<4x32x56xbf16, #tpu.memory_space<vmem>>, vector<1x32x56xbf16>
    %43 = vector.shape_cast %42 : vector<1x32x56xbf16> to vector<32x56xbf16>
    %cst_37 = arith.constant dense<0.000000e+00> : vector<14x56xf32>
    %44 = tpu.matmul %41, %43, %cst_37 {dimension_numbers = #tpu.dot_dimension_numbers<[1], [0], [0], [1], [0, 0, 1, 1], [], []>} : vector<14x32xbf16>, vector<32x56xbf16>, vector<14x56xf32> -> vector<14x56xf32>
    %45 = arith.addf %39, %44 : vector<14x56xf32>
    %c34 = arith.constant 34 : index
    %c0_38 = arith.constant 0 : index
    %46 = tpu.strided_load %arg0[%c34, %c0_38] {strides = array<i32: 2, 1>} : memref<64x32xf32, #tpu.memory_space<vmem>>, vector<14x32xf32>
    %47 = arith.truncf %46 : vector<14x32xf32> to vector<14x32xbf16>
    %c2_39 = arith.constant 2 : index
    %c0_40 = arith.constant 0 : index
    %c0_41 = arith.constant 0 : index
    %48 = vector.load %arg1[%c2_39, %c0_40, %c0_41] : memref<4x32x56xbf16, #tpu.memory_space<vmem>>, vector<1x32x56xbf16>
    %49 = vector.shape_cast %48 : vector<1x32x56xbf16> to vector<32x56xbf16>
    %cst_42 = arith.constant dense<0.000000e+00> : vector<14x56xf32>
    %50 = tpu.matmul %47, %49, %cst_42 {dimension_numbers = #tpu.dot_dimension_numbers<[1], [0], [0], [1], [0, 0, 1, 1], [], []>} : vector<14x32xbf16>, vector<32x56xbf16>, vector<14x56xf32> -> vector<14x56xf32>
    %51 = arith.addf %45, %50 : vector<14x56xf32>
    %c35 = arith.constant 35 : index
    %c0_43 = arith.constant 0 : index
    %52 = tpu.strided_load %arg0[%c35, %c0_43] {strides = array<i32: 2, 1>} : memref<64x32xf32, #tpu.memory_space<vmem>>, vector<14x32xf32>
    %53 = arith.truncf %52 : vector<14x32xf32> to vector<14x32xbf16>
    %c3_44 = arith.constant 3 : index
    %c0_45 = arith.constant 0 : index
    %c0_46 = arith.constant 0 : index
    %54 = vector.load %arg1[%c3_44, %c0_45, %c0_46] : memref<4x32x56xbf16, #tpu.memory_space<vmem>>, vector<1x32x56xbf16>
    %55 = vector.shape_cast %54 : vector<1x32x56xbf16> to vector<32x56xbf16>
    %cst_47 = arith.constant dense<0.000000e+00> : vector<14x56xf32>
    %56 = tpu.matmul %53, %55, %cst_47 {dimension_numbers = #tpu.dot_dimension_numbers<[1], [0], [0], [1], [0, 0, 1, 1], [], []>} : vector<14x32xbf16>, vector<32x56xbf16>, vector<14x56xf32> -> vector<14x56xf32>
    %57 = arith.addf %51, %56 : vector<14x56xf32>
    %c0_48 = arith.constant 0 : index
    %c0_49 = arith.constant 0 : index
    %58 = vector.load %arg2[%c0_48, %c0_49] : memref<1x56xf32, #tpu.memory_space<vmem>>, vector<1x56xf32>
    %59 = vector.broadcast %58 : vector<1x56xf32> to vector<14x56xf32>
    %60 = arith.addf %57, %59 : vector<14x56xf32>
    %cst_50 = arith.constant 0.000000e+00 : f32
    %61 = vector.broadcast %cst_50 : f32 to vector<14x56xf32>
    %62 = arith.maximumf %60, %61 : vector<14x56xf32>
    %c17 = arith.constant 17 : index
    %c4_51 = arith.constant 4 : index
    %63 = vector.load %arg9[%c17, %c4_51] : memref<32x64xf32, #tpu.memory_space<vmem>>, vector<14x56xf32>
    tpu.vector_store %arg9[%c17, %c4_51], %62 {strides = array<i32>} : memref<32x64xf32, #tpu.memory_space<vmem>>, vector<14x56xf32>,
    %cst_52 = arith.constant 0.000000e+00 : f32
    %64 = vector.broadcast %cst_52 : f32 to vector<7x56xf32>
    %c0_53 = arith.constant 0 : index
    %c0_54 = arith.constant 0 : index
    %65 = tpu.strided_load %arg9[%c0_53, %c0_54] {strides = array<i32: 2, 1>} : memref<32x64xf32, #tpu.memory_space<vmem>>, vector<7x64xf32>
    %66 = arith.truncf %65 : vector<7x64xf32> to vector<7x64xbf16>
    %c0_55 = arith.constant 0 : index
    %c0_56 = arith.constant 0 : index
    %c0_57 = arith.constant 0 : index
    %67 = vector.load %arg3[%c0_55, %c0_56, %c0_57] : memref<4x64x56xbf16, #tpu.memory_space<vmem>>, vector<1x64x56xbf16>
    %68 = vector.shape_cast %67 : vector<1x64x56xbf16> to vector<64x56xbf16>
    %cst_58 = arith.constant dense<0.000000e+00> : vector<7x56xf32>
    %69 = tpu.matmul %66, %68, %cst_58 {dimension_numbers = #tpu.dot_dimension_numbers<[1], [0], [0], [1], [0, 0, 1, 1], [], []>} : vector<7x64xbf16>, vector<64x56xbf16>, vector<7x56xf32> -> vector<7x56xf32>
    %70 = arith.addf %64, %69 : vector<7x56xf32>
    %c1_59 = arith.constant 1 : index
    %c0_60 = arith.constant 0 : index
    %71 = tpu.strided_load %arg9[%c1_59, %c0_60] {strides = array<i32: 2, 1>} : memref<32x64xf32, #tpu.memory_space<vmem>>, vector<7x64xf32>
    %72 = arith.truncf %71 : vector<7x64xf32> to vector<7x64xbf16>
    %c1_61 = arith.constant 1 : index
    %c0_62 = arith.constant 0 : index
    %c0_63 = arith.constant 0 : index
    %73 = vector.load %arg3[%c1_61, %c0_62, %c0_63] : memref<4x64x56xbf16, #tpu.memory_space<vmem>>, vector<1x64x56xbf16>
    %74 = vector.shape_cast %73 : vector<1x64x56xbf16> to vector<64x56xbf16>
    %cst_64 = arith.constant dense<0.000000e+00> : vector<7x56xf32>
    %75 = tpu.matmul %72, %74, %cst_64 {dimension_numbers = #tpu.dot_dimension_numbers<[1], [0], [0], [1], [0, 0, 1, 1], [], []>} : vector<7x64xbf16>, vector<64x56xbf16>, vector<7x56xf32> -> vector<7x56xf32>
    %76 = arith.addf %70, %75 : vector<7x56xf32>
    %c2_65 = arith.constant 2 : index
    %c0_66 = arith.constant 0 : index
    %77 = tpu.strided_load %arg9[%c2_65, %c0_66] {strides = array<i32: 2, 1>} : memref<32x64xf32, #tpu.memory_space<vmem>>, vector<7x64xf32>
    %78 = arith.truncf %77 : vector<7x64xf32> to vector<7x64xbf16>
    %c2_67 = arith.constant 2 : index
    %c0_68 = arith.constant 0 : index
    %c0_69 = arith.constant 0 : index
    %79 = vector.load %arg3[%c2_67, %c0_68, %c0_69] : memref<4x64x56xbf16, #tpu.memory_space<vmem>>, vector<1x64x56xbf16>
    %80 = vector.shape_cast %79 : vector<1x64x56xbf16> to vector<64x56xbf16>
    %cst_70 = arith.constant dense<0.000000e+00> : vector<7x56xf32>
    %81 = tpu.matmul %78, %80, %cst_70 {dimension_numbers = #tpu.dot_dimension_numbers<[1], [0], [0], [1], [0, 0, 1, 1], [], []>} : vector<7x64xbf16>, vector<64x56xbf16>, vector<7x56xf32> -> vector<7x56xf32>
    %82 = arith.addf %76, %81 : vector<7x56xf32>
    %c3_71 = arith.constant 3 : index
    %c0_72 = arith.constant 0 : index
    %83 = tpu.strided_load %arg9[%c3_71, %c0_72] {strides = array<i32: 2, 1>} : memref<32x64xf32, #tpu.memory_space<vmem>>, vector<7x64xf32>
    %84 = arith.truncf %83 : vector<7x64xf32> to vector<7x64xbf16>
    %c3_73 = arith.constant 3 : index
    %c0_74 = arith.constant 0 : index
    %c0_75 = arith.constant 0 : index
    %85 = vector.load %arg3[%c3_73, %c0_74, %c0_75] : memref<4x64x56xbf16, #tpu.memory_space<vmem>>, vector<1x64x56xbf16>
    %86 = vector.shape_cast %85 : vector<1x64x56xbf16> to vector<64x56xbf16>
    %cst_76 = arith.constant dense<0.000000e+00> : vector<7x56xf32>
    %87 = tpu.matmul %84, %86, %cst_76 {dimension_numbers = #tpu.dot_dimension_numbers<[1], [0], [0], [1], [0, 0, 1, 1], [], []>} : vector<7x64xbf16>, vector<64x56xbf16>, vector<7x56xf32> -> vector<7x56xf32>
    %88 = arith.addf %82, %87 : vector<7x56xf32>
    %c0_77 = arith.constant 0 : index
    %c0_78 = arith.constant 0 : index
    %89 = vector.load %arg4[%c0_77, %c0_78] : memref<1x56xf32, #tpu.memory_space<vmem>>, vector<1x56xf32>
    %90 = vector.broadcast %89 : vector<1x56xf32> to vector<7x56xf32>
    %91 = arith.addf %88, %90 : vector<7x56xf32>
    %cst_79 = arith.constant 0.000000e+00 : f32
    %92 = vector.broadcast %cst_79 : f32 to vector<7x56xf32>
    %93 = arith.maximumf %91, %92 : vector<7x56xf32>
    %c0_80 = arith.constant 0 : index
    %c0_81 = arith.constant 0 : index
    %94 = vector.load %arg10[%c0_80, %c0_81] : memref<14x56xf32, #tpu.memory_space<vmem>>, vector<7x56xf32>
    tpu.vector_store %arg10[%c0_80, %c0_81], %93 {strides = array<i32>} : memref<14x56xf32, #tpu.memory_space<vmem>>, vector<7x56xf32>,
    %cst_82 = arith.constant 0.000000e+00 : f32
    %95 = vector.broadcast %cst_82 : f32 to vector<7x56xf32>
    %c16 = arith.constant 16 : index
    %c0_83 = arith.constant 0 : index
    %96 = tpu.strided_load %arg9[%c16, %c0_83] {strides = array<i32: 2, 1>} : memref<32x64xf32, #tpu.memory_space<vmem>>, vector<7x64xf32>
    %97 = arith.truncf %96 : vector<7x64xf32> to vector<7x64xbf16>
    %c0_84 = arith.constant 0 : index
    %c0_85 = arith.constant 0 : index
    %c0_86 = arith.constant 0 : index
    %98 = vector.load %arg3[%c0_84, %c0_85, %c0_86] : memref<4x64x56xbf16, #tpu.memory_space<vmem>>, vector<1x64x56xbf16>
    %99 = vector.shape_cast %98 : vector<1x64x56xbf16> to vector<64x56xbf16>
    %cst_87 = arith.constant dense<0.000000e+00> : vector<7x56xf32>
    %100 = tpu.matmul %97, %99, %cst_87 {dimension_numbers = #tpu.dot_dimension_numbers<[1], [0], [0], [1], [0, 0, 1, 1], [], []>} : vector<7x64xbf16>, vector<64x56xbf16>, vector<7x56xf32> -> vector<7x56xf32>
    %101 = arith.addf %95, %100 : vector<7x56xf32>
    %c17_88 = arith.constant 17 : index
    %c0_89 = arith.constant 0 : index
    %102 = tpu.strided_load %arg9[%c17_88, %c0_89] {strides = array<i32: 2, 1>} : memref<32x64xf32, #tpu.memory_space<vmem>>, vector<7x64xf32>
    %103 = arith.truncf %102 : vector<7x64xf32> to vector<7x64xbf16>
    %c1_90 = arith.constant 1 : index
    %c0_91 = arith.constant 0 : index
    %c0_92 = arith.constant 0 : index
    %104 = vector.load %arg3[%c1_90, %c0_91, %c0_92] : memref<4x64x56xbf16, #tpu.memory_space<vmem>>, vector<1x64x56xbf16>
    %105 = vector.shape_cast %104 : vector<1x64x56xbf16> to vector<64x56xbf16>
    %cst_93 = arith.constant dense<0.000000e+00> : vector<7x56xf32>
    %106 = tpu.matmul %103, %105, %cst_93 {dimension_numbers = #tpu.dot_dimension_numbers<[1], [0], [0], [1], [0, 0, 1, 1], [], []>} : vector<7x64xbf16>, vector<64x56xbf16>, vector<7x56xf32> -> vector<7x56xf32>
    %107 = arith.addf %101, %106 : vector<7x56xf32>
    %c18 = arith.constant 18 : index
    %c0_94 = arith.constant 0 : index
    %108 = tpu.strided_load %arg9[%c18, %c0_94] {strides = array<i32: 2, 1>} : memref<32x64xf32, #tpu.memory_space<vmem>>, vector<7x64xf32>
    %109 = arith.truncf %108 : vector<7x64xf32> to vector<7x64xbf16>
    %c2_95 = arith.constant 2 : index
    %c0_96 = arith.constant 0 : index
    %c0_97 = arith.constant 0 : index
    %110 = vector.load %arg3[%c2_95, %c0_96, %c0_97] : memref<4x64x56xbf16, #tpu.memory_space<vmem>>, vector<1x64x56xbf16>
    %111 = vector.shape_cast %110 : vector<1x64x56xbf16> to vector<64x56xbf16>
    %cst_98 = arith.constant dense<0.000000e+00> : vector<7x56xf32>
    %112 = tpu.matmul %109, %111, %cst_98 {dimension_numbers = #tpu.dot_dimension_numbers<[1], [0], [0], [1], [0, 0, 1, 1], [], []>} : vector<7x64xbf16>, vector<64x56xbf16>, vector<7x56xf32> -> vector<7x56xf32>
    %113 = arith.addf %107, %112 : vector<7x56xf32>
    %c19 = arith.constant 19 : index
    %c0_99 = arith.constant 0 : index
    %114 = tpu.strided_load %arg9[%c19, %c0_99] {strides = array<i32: 2, 1>} : memref<32x64xf32, #tpu.memory_space<vmem>>, vector<7x64xf32>
    %115 = arith.truncf %114 : vector<7x64xf32> to vector<7x64xbf16>
    %c3_100 = arith.constant 3 : index
    %c0_101 = arith.constant 0 : index
    %c0_102 = arith.constant 0 : index
    %116 = vector.load %arg3[%c3_100, %c0_101, %c0_102] : memref<4x64x56xbf16, #tpu.memory_space<vmem>>, vector<1x64x56xbf16>
    %117 = vector.shape_cast %116 : vector<1x64x56xbf16> to vector<64x56xbf16>
    %cst_103 = arith.constant dense<0.000000e+00> : vector<7x56xf32>
    %118 = tpu.matmul %115, %117, %cst_103 {dimension_numbers = #tpu.dot_dimension_numbers<[1], [0], [0], [1], [0, 0, 1, 1], [], []>} : vector<7x64xbf16>, vector<64x56xbf16>, vector<7x56xf32> -> vector<7x56xf32>
    %119 = arith.addf %113, %118 : vector<7x56xf32>
    %c0_104 = arith.constant 0 : index
    %c0_105 = arith.constant 0 : index
    %120 = vector.load %arg4[%c0_104, %c0_105] : memref<1x56xf32, #tpu.memory_space<vmem>>, vector<1x56xf32>
    %121 = vector.broadcast %120 : vector<1x56xf32> to vector<7x56xf32>
    %122 = arith.addf %119, %121 : vector<7x56xf32>
    %cst_106 = arith.constant 0.000000e+00 : f32
    %123 = vector.broadcast %cst_106 : f32 to vector<7x56xf32>
    %124 = arith.maximumf %122, %123 : vector<7x56xf32>
    %c7 = arith.constant 7 : index
    %c0_107 = arith.constant 0 : index
    %125 = vector.load %arg10[%c7, %c0_107] : memref<14x56xf32, #tpu.memory_space<vmem>>, vector<7x56xf32>
    tpu.vector_store %arg10[%c7, %c0_107], %124 {strides = array<i32>} : memref<14x56xf32, #tpu.memory_space<vmem>>, vector<7x56xf32>,
    %c0_108 = arith.constant 0 : index
    %c0_109 = arith.constant 0 : index
    %126 = vector.load %arg6[%c0_108, %c0_109] : memref<1x16xf32, #tpu.memory_space<vmem>>, vector<1x16xf32>
    %cst_110 = arith.constant 0.000000e+00 : f32
    %127 = vector.broadcast %cst_110 : f32 to vector<2x16xf32>
    %128 = vector.broadcast %126 : vector<1x16xf32> to vector<2x16xf32>
    %129 = arith.addf %128, %127 : vector<2x16xf32>
    %c0_111 = arith.constant 0 : index
    %c0_112 = arith.constant 0 : index
    %130 = tpu.strided_load %arg10[%c0_111, %c0_112] {strides = array<i32: 7, 1>} : memref<14x56xf32, #tpu.memory_space<vmem>>, vector<2x56xf32>
    %c0_113 = arith.constant 0 : index
    %c0_114 = arith.constant 0 : index
    %131 = vector.load %arg5[%c0_113, %c0_114] : memref<392x16xbf16, #tpu.memory_space<vmem>>, vector<56x16xbf16>
    %132 = arith.truncf %130 : vector<2x56xf32> to vector<2x56xbf16>
    %cst_115 = arith.constant dense<0.000000e+00> : vector<2x16xf32>
    %133 = tpu.matmul %132, %131, %cst_115 {dimension_numbers = #tpu.dot_dimension_numbers<[1], [0], [0], [1], [0, 0, 1, 1], [], []>} : vector<2x56xbf16>, vector<56x16xbf16>, vector<2x16xf32> -> vector<2x16xf32>
    %134 = arith.addf %129, %133 : vector<2x16xf32>
    %c1_116 = arith.constant 1 : index
    %c0_117 = arith.constant 0 : index
    %135 = tpu.strided_load %arg10[%c1_116, %c0_117] {strides = array<i32: 7, 1>} : memref<14x56xf32, #tpu.memory_space<vmem>>, vector<2x56xf32>
    %c56 = arith.constant 56 : index
    %c0_118 = arith.constant 0 : index
    %136 = vector.load %arg5[%c56, %c0_118] : memref<392x16xbf16, #tpu.memory_space<vmem>>, vector<56x16xbf16>
    %137 = arith.truncf %135 : vector<2x56xf32> to vector<2x56xbf16>
    %cst_119 = arith.constant dense<0.000000e+00> : vector<2x16xf32>
    %138 = tpu.matmul %137, %136, %cst_119 {dimension_numbers = #tpu.dot_dimension_numbers<[1], [0], [0], [1], [0, 0, 1, 1], [], []>} : vector<2x56xbf16>, vector<56x16xbf16>, vector<2x16xf32> -> vector<2x16xf32>
    %139 = arith.addf %134, %138 : vector<2x16xf32>
    %c2_120 = arith.constant 2 : index
    %c0_121 = arith.constant 0 : index
    %140 = tpu.strided_load %arg10[%c2_120, %c0_121] {strides = array<i32: 7, 1>} : memref<14x56xf32, #tpu.memory_space<vmem>>, vector<2x56xf32>
    %c112 = arith.constant 112 : index
    %c0_122 = arith.constant 0 : index
    %141 = vector.load %arg5[%c112, %c0_122] : memref<392x16xbf16, #tpu.memory_space<vmem>>, vector<56x16xbf16>
    %142 = arith.truncf %140 : vector<2x56xf32> to vector<2x56xbf16>
    %cst_123 = arith.constant dense<0.000000e+00> : vector<2x16xf32>
    %143 = tpu.matmul %142, %141, %cst_123 {dimension_numbers = #tpu.dot_dimension_numbers<[1], [0], [0], [1], [0, 0, 1, 1], [], []>} : vector<2x56xbf16>, vector<56x16xbf16>, vector<2x16xf32> -> vector<2x16xf32>
    %144 = arith.addf %139, %143 : vector<2x16xf32>
    %c3_124 = arith.constant 3 : index
    %c0_125 = arith.constant 0 : index
    %145 = tpu.strided_load %arg10[%c3_124, %c0_125] {strides = array<i32: 7, 1>} : memref<14x56xf32, #tpu.memory_space<vmem>>, vector<2x56xf32>
    %c168 = arith.constant 168 : index
    %c0_126 = arith.constant 0 : index
    %146 = vector.load %arg5[%c168, %c0_126] : memref<392x16xbf16, #tpu.memory_space<vmem>>, vector<56x16xbf16>
    %147 = arith.truncf %145 : vector<2x56xf32> to vector<2x56xbf16>
    %cst_127 = arith.constant dense<0.000000e+00> : vector<2x16xf32>
    %148 = tpu.matmul %147, %146, %cst_127 {dimension_numbers = #tpu.dot_dimension_numbers<[1], [0], [0], [1], [0, 0, 1, 1], [], []>} : vector<2x56xbf16>, vector<56x16xbf16>, vector<2x16xf32> -> vector<2x16xf32>
    %149 = arith.addf %144, %148 : vector<2x16xf32>
    %c4_128 = arith.constant 4 : index
    %c0_129 = arith.constant 0 : index
    %150 = tpu.strided_load %arg10[%c4_128, %c0_129] {strides = array<i32: 7, 1>} : memref<14x56xf32, #tpu.memory_space<vmem>>, vector<2x56xf32>
    %c224 = arith.constant 224 : index
    %c0_130 = arith.constant 0 : index
    %151 = vector.load %arg5[%c224, %c0_130] : memref<392x16xbf16, #tpu.memory_space<vmem>>, vector<56x16xbf16>
    %152 = arith.truncf %150 : vector<2x56xf32> to vector<2x56xbf16>
    %cst_131 = arith.constant dense<0.000000e+00> : vector<2x16xf32>
    %153 = tpu.matmul %152, %151, %cst_131 {dimension_numbers = #tpu.dot_dimension_numbers<[1], [0], [0], [1], [0, 0, 1, 1], [], []>} : vector<2x56xbf16>, vector<56x16xbf16>, vector<2x16xf32> -> vector<2x16xf32>
    %154 = arith.addf %149, %153 : vector<2x16xf32>
    %c5 = arith.constant 5 : index
    %c0_132 = arith.constant 0 : index
    %155 = tpu.strided_load %arg10[%c5, %c0_132] {strides = array<i32: 7, 1>} : memref<14x56xf32, #tpu.memory_space<vmem>>, vector<2x56xf32>
    %c280 = arith.constant 280 : index
    %c0_133 = arith.constant 0 : index
    %156 = vector.load %arg5[%c280, %c0_133] : memref<392x16xbf16, #tpu.memory_space<vmem>>, vector<56x16xbf16>
    %157 = arith.truncf %155 : vector<2x56xf32> to vector<2x56xbf16>
    %cst_134 = arith.constant dense<0.000000e+00> : vector<2x16xf32>
    %158 = tpu.matmul %157, %156, %cst_134 {dimension_numbers = #tpu.dot_dimension_numbers<[1], [0], [0], [1], [0, 0, 1, 1], [], []>} : vector<2x56xbf16>, vector<56x16xbf16>, vector<2x16xf32> -> vector<2x16xf32>
    %159 = arith.addf %154, %158 : vector<2x16xf32>
    %c6 = arith.constant 6 : index
    %c0_135 = arith.constant 0 : index
    %160 = tpu.strided_load %arg10[%c6, %c0_135] {strides = array<i32: 7, 1>} : memref<14x56xf32, #tpu.memory_space<vmem>>, vector<2x56xf32>
    %c336 = arith.constant 336 : index
    %c0_136 = arith.constant 0 : index
    %161 = vector.load %arg5[%c336, %c0_136] : memref<392x16xbf16, #tpu.memory_space<vmem>>, vector<56x16xbf16>
    %162 = arith.truncf %160 : vector<2x56xf32> to vector<2x56xbf16>
    %cst_137 = arith.constant dense<0.000000e+00> : vector<2x16xf32>
    %163 = tpu.matmul %162, %161, %cst_137 {dimension_numbers = #tpu.dot_dimension_numbers<[1], [0], [0], [1], [0, 0, 1, 1], [], []>} : vector<2x56xbf16>, vector<56x16xbf16>, vector<2x16xf32> -> vector<2x16xf32>
    %164 = arith.addf %159, %163 : vector<2x16xf32>
    %165 = vector.extract_strided_slice %164 {offsets = [0, 0], sizes = [2, 8], strides = [1, 1]} : vector<2x16xf32> to vector<2x8xf32>
    %c0_138 = arith.constant 0 : index
    %c0_139 = arith.constant 0 : index
    %166 = vector.load %arg7[%c0_138, %c0_139] : memref<2x8xf32, #tpu.memory_space<vmem>>, vector<2x8xf32>
    tpu.vector_store %arg7[%c0_138, %c0_139], %165 {strides = array<i32>} : memref<2x8xf32, #tpu.memory_space<vmem>>, vector<2x8xf32>,
    %167 = vector.extract_strided_slice %164 {offsets = [0, 8], sizes = [2, 8], strides = [1, 1]} : vector<2x16xf32> to vector<2x8xf32>
    %c0_140 = arith.constant 0 : index
    %c0_141 = arith.constant 0 : index
    %168 = vector.load %arg8[%c0_140, %c0_141] : memref<2x8xf32, #tpu.memory_space<vmem>>, vector<2x8xf32>
    tpu.vector_store %arg8[%c0_140, %c0_141], %167 {strides = array<i32>} : memref<2x8xf32, #tpu.memory_space<vmem>>, vector<2x8xf32>,
    return
  }
}

</mosaic_0001>

<llo_original>
// kernel: tile.13
$region0: #{tile.13}
  #allocation0 [shape = 's32[1]{0}', space=sflag, size = 0x4, scoped, tag = 'scoped memory for tile.13']
  %s0 = inlined_call_operand.vmem [shape: f32[4], index: 0, kind: input, shape index: {}]
  %s1 = inlined_call_operand.vmem [shape: f32[14,4], index: 1, kind: output, shape index: {}]
  // Predicated region
  $region2: #{tile.13} parent=0 // pred_check
    _
  $region3: #{tile.13} parent=0 // pred_check_branch
    %3 = sbr.rel (0) target = $region5
  $region4: #{tile.13} parent=0 // pred_region
    _
  $region5: #{tile.13} parent=0 // pred_fallthru
    _
  %v4 = vld [vmem:[%s0] ss:$0 sm:$0xff]
  %5 = vst [vmem:[%s1] sm:$0xff] %v4
  %s6 = scalar_lea.vmem %s1, 8
  %7 = vst [vmem:[%s6] sm:$0xff] %v4

// kernel: tile.14
$region0: #{tile.14}
  %s0 = inlined_call_operand.vmem [shape: f32[14,4], index: 0, kind: input, shape index: {}]
  %s1 = inlined_call_operand.vmem [shape: f32[1,56], index: 1, kind: output, shape index: {}]
  $region1: #{tile.14} parent=0
    #allocation0 [shape = 'u8[4096]{0}', space=vmem, size = 0x1000, scoped, tag = 'scoped mem for output reshape']
    %v2 = vld [vmem:[%s0] sm:$0x1]
    %vm3 = vcmask 31744
    %4 = vst.msk [vmem:[#allocation0] sm:$0x1] %vm3, %v2
    %s5 = scalar_lea.vmem %s0, 13
    %v6 = vld [vmem:[%s5] sm:$0x1]
    %7 = vrot.lane.b32.xlu0 %v6, 52
    %v8 = vpop.permute.xlu0 %7
    %vm9 = vcmask 458144
    %10 = vst.msk [vmem:[#allocation0] sm:$0x1] %vm9, %v8
    %s11 = scalar_lea.vmem %s0, 12
    %v12 = vld [vmem:[%s11] sm:$0x1]
    %13 = vrot.lane.b32.xlu0 %v12, 48
    %v14 = vpop.permute.xlu0 %13
    %vm15 = vcmask 425344
    %16 = vst.msk [vmem:[#allocation0] sm:$0x1] %vm15, %v14
    %s17 = scalar_lea.vmem %s0, 11
    %v18 = vld [vmem:[%s17] sm:$0x1]
    %19 = vrot.lane.b32.xlu0 %v18, 44
    %v20 = vpop.permute.xlu0 %19
    %vm21 = vcmask 392544
    %22 = vst.msk [vmem:[#allocation0] sm:$0x1] %vm21, %v20
    %s23 = scalar_lea.vmem %s0, 10
    %v24 = vld [vmem:[%s23] sm:$0x1]
    %25 = vrot.lane.b32.xlu0 %v24, 40
    %v26 = vpop.permute.xlu0 %25
    %vm27 = vcmask 359744
    %28 = vst.msk [vmem:[#allocation0] sm:$0x1] %vm27, %v26
    %s29 = scalar_lea.vmem %s0, 9
    %v30 = vld [vmem:[%s29] sm:$0x1]
    %31 = vrot.lane.b32.xlu0 %v30, 36
    %v32 = vpop.permute.xlu0 %31
    %vm33 = vcmask 326944
    %34 = vst.msk [vmem:[#allocation0] sm:$0x1] %vm33, %v32
    %s35 = scalar_lea.vmem %s0, 8
    %v36 = vld [vmem:[%s35] sm:$0x1]
    %37 = vrot.lane.b32.xlu0 %v36, 32
    %v38 = vpop.permute.xlu0 %37
    %vm39 = vcmask 294144
    %40 = vst.msk [vmem:[#allocation0] sm:$0x1] %vm39, %v38
    %s41 = scalar_lea.vmem %s0, 7
    %v42 = vld [vmem:[%s41] sm:$0x1]
    %43 = vrot.lane.b32.xlu0 %v42, 28
    %v44 = vpop.permute.xlu0 %43
    %vm45 = vcmask 261344
    %46 = vst.msk [vmem:[#allocation0] sm:$0x1] %vm45, %v44
    %s47 = scalar_lea.vmem %s0, 6
    %v48 = vld [vmem:[%s47] sm:$0x1]
    %49 = vrot.lane.b32.xlu0 %v48, 24
    %v50 = vpop.permute.xlu0 %49
    %vm51 = vcmask 228544
    %52 = vst.msk [vmem:[#allocation0] sm:$0x1] %vm51, %v50
    %s53 = scalar_lea.vmem %s0, 5
    %v54 = vld [vmem:[%s53] sm:$0x1]
    %55 = vrot.lane.b32.xlu0 %v54, 20
    %v56 = vpop.permute.xlu0 %55
    %vm57 = vcmask 195744
    %58 = vst.msk [vmem:[#allocation0] sm:$0x1] %vm57, %v56
    %s59 = scalar_lea.vmem %s0, 4
    %v60 = vld [vmem:[%s59] sm:$0x1]
    %61 = vrot.lane.b32.xlu0 %v60, 16
    %v62 = vpop.permute.xlu0 %61
    %vm63 = vcmask 162944
    %64 = vst.msk [vmem:[#allocation0] sm:$0x1] %vm63, %v62
    %s65 = scalar_lea.vmem %s0, 3
    %v66 = vld [vmem:[%s65] sm:$0x1]
    %67 = vrot.lane.b32.xlu0 %v66, 12
    %v68 = vpop.permute.xlu0 %67
    %vm69 = vcmask 130144
    %70 = vst.msk [vmem:[#allocation0] sm:$0x1] %vm69, %v68
    %s71 = scalar_lea.vmem %s0, 2
    %v72 = vld [vmem:[%s71] sm:$0x1]
    %73 = vrot.lane.b32.xlu0 %v72, 8
    %v74 = vpop.permute.xlu0 %73
    %vm75 = vcmask 97344
    %76 = vst.msk [vmem:[#allocation0] sm:$0x1] %vm75, %v74
    %s77 = scalar_lea.vmem %s0, 1
    %v78 = vld [vmem:[%s77] sm:$0x1]
    %79 = vrot.lane.b32.xlu0 %v78, 4
    %v80 = vpop.permute.xlu0 %79
    %vm81 = vcmask 64544
    %82 = vst.msk [vmem:[#allocation0] sm:$0x1] %vm81, %v80
    %s84 = sshllo.u32 0, 1
    %v86 = vld [vmem:[#allocation0] sm:%s84]
    %s87 = sshllo.u32 0, 1
    %88 = vst [vmem:[%s1] sm:%s87] %v86

// kernel: tile.18
$region0: #{tile.18}
  #allocation0 [shape = 's32[1]{0}', space=sflag, size = 0x4, scoped, tag = 'scoped memory for tile.18']
  %s0 = inlined_call_operand.vmem [shape: f32[8], index: 0, kind: input, shape index: {}]
  %s1 = inlined_call_operand.vmem [shape: f32[7,8], index: 1, kind: output, shape index: {}]
  // Predicated region
  $region2: #{tile.18} parent=0 // pred_check
    _
  $region3: #{tile.18} parent=0 // pred_check_branch
    %3 = sbr.rel (0) target = $region5
  $region4: #{tile.18} parent=0 // pred_region
    _
  $region5: #{tile.18} parent=0 // pred_fallthru
    _
  %v4 = vld [vmem:[%s0] ss:$0 sm:$0xff]
  %5 = vst [vmem:[%s1] sm:$0xff] %v4

// kernel: tile.19
$region0: #{tile.19}
  %s0 = inlined_call_operand.vmem [shape: f32[7,8], index: 0, kind: input, shape index: {}]
  %s1 = inlined_call_operand.vmem [shape: f32[1,56], index: 1, kind: output, shape index: {}]
  $region1: #{tile.19} parent=0
    #allocation0 [shape = 'u8[4096]{0}', space=vmem, size = 0x1000, scoped, tag = 'scoped mem for output reshape']
    %v2 = vld [vmem:[%s0] sm:$0x1]
    %vm3 = vcmask 64512
    %4 = vst.msk [vmem:[#allocation0] sm:$0x1] %vm3, %v2
    %s5 = scalar_lea.vmem %s0, 6
    %v6 = vld [vmem:[%s5] sm:$0x1]
    %7 = vrot.lane.b32.xlu0 %v6, 48
    %v8 = vpop.permute.xlu0 %7
    %vm9 = vcmask 458112
    %10 = vst.msk [vmem:[#allocation0] sm:$0x1] %vm9, %v8
    %s11 = scalar_lea.vmem %s0, 5
    %v12 = vld [vmem:[%s11] sm:$0x1]
    %13 = vrot.lane.b32.xlu0 %v12, 40
    %v14 = vpop.permute.xlu0 %13
    %vm15 = vcmask 392512
    %16 = vst.msk [vmem:[#allocation0] sm:$0x1] %vm15, %v14
    %s17 = scalar_lea.vmem %s0, 4
    %v18 = vld [vmem:[%s17] sm:$0x1]
    %19 = vrot.lane.b32.xlu0 %v18, 32
    %v20 = vpop.permute.xlu0 %19
    %vm21 = vcmask 326912
    %22 = vst.msk [vmem:[#allocation0] sm:$0x1] %vm21, %v20
    %s23 = scalar_lea.vmem %s0, 3
    %v24 = vld [vmem:[%s23] sm:$0x1]
    %25 = vrot.lane.b32.xlu0 %v24, 24
    %v26 = vpop.permute.xlu0 %25
    %vm27 = vcmask 261312
    %28 = vst.msk [vmem:[#allocation0] sm:$0x1] %vm27, %v26
    %s29 = scalar_lea.vmem %s0, 2
    %v30 = vld [vmem:[%s29] sm:$0x1]
    %31 = vrot.lane.b32.xlu0 %v30, 16
    %v32 = vpop.permute.xlu0 %31
    %vm33 = vcmask 195712
    %34 = vst.msk [vmem:[#allocation0] sm:$0x1] %vm33, %v32
    %s35 = scalar_lea.vmem %s0, 1
    %v36 = vld [vmem:[%s35] sm:$0x1]
    %37 = vrot.lane.b32.xlu0 %v36, 8
    %v38 = vpop.permute.xlu0 %37
    %vm39 = vcmask 130112
    %40 = vst.msk [vmem:[#allocation0] sm:$0x1] %vm39, %v38
    %s42 = sshllo.u32 0, 1
    %v44 = vld [vmem:[#allocation0] sm:%s42]
    %s45 = sshllo.u32 0, 1
    %46 = vst [vmem:[%s1] sm:%s45] %v44

// kernel: encoder_forward.1
$region0: #{encoder_forward.1}
  #allocation0 [shape = 'u32[]', space=smem, size = 0x4, offset = 0x4, fixed_abs, tag = 'smem constant byte address 0x4 - core index']
  #allocation1 [shape = 'u32[144,128]{1,0:T(1,128)}', space=vmem, size = 0x12000, scoped, tag = 'internal scratch']
  #allocation2 [shape = 'f32[32,64]{1,0:T(8,128)}', space=vmem, size = 0x4000, scoped, tag = 'scratch operand']
  #allocation3 [shape = 'f32[14,56]{1,0:T(8,128)}', space=vmem, size = 0x2000, scoped, tag = 'scratch operand']
  %s0 = inlined_call_operand.vmem [shape: f32[64,32], index: 0, kind: input, shape index: {}]
  %s1 = inlined_call_operand.vmem [shape: bf16[4,32,56], index: 1, kind: input, shape index: {}]
  %s2 = inlined_call_operand.vmem [shape: f32[1,56], index: 2, kind: input, shape index: {}]
  %s3 = inlined_call_operand.vmem [shape: bf16[4,64,56], index: 3, kind: input, shape index: {}]
  %s4 = inlined_call_operand.vmem [shape: f32[1,56], index: 4, kind: input, shape index: {}]
  %s5 = inlined_call_operand.vmem [shape: bf16[392,16], index: 5, kind: input, shape index: {}]
  %s6 = inlined_call_operand.vmem [shape: f32[1,16], index: 6, kind: input, shape index: {}]
  %s7 = inlined_call_operand.hbm [shape: f32[2,8], index: 7, kind: output, shape index: {0}]
  %s8 = inlined_call_operand.hbm [shape: f32[2,8], index: 8, kind: output, shape index: {1}]
  %9 = xla_tuple %s7, %s8
  %s10 = sld [smem:[#allocation0]]
  $region46: #{encoder_forward.1} parent=0
    _
  %s12 = ssub.s32 1, %s10
  %s13 = scalar_select 0, %s12, %s10
  $region1: #{encoder_forward.1} parent=0
    #allocation4 [shape = 'u8[1024]{0}', space=vmem, size = 0x400, scoped, tag = 'output window, operand 0, single buffered']
    #allocation5 [shape = 's32[1]{0}', space=sflag, size = 0x4, scoped, tag = 'scoped memory for encoder_forward.1']
    #allocation6 [shape = 'u8[1024]{0}', space=vmem, size = 0x400, scoped, tag = 'output window, operand 1, single buffered']
    #allocation7 [shape = 's32[1]{0}', space=sflag, size = 0x4, scoped, tag = 'scoped memory for encoder_forward.1']
    %14 = vsyncpa [#allocation5], 0
    %15 = vsyncpa [#allocation7], 0
    // Predicated region
    $region2: #{encoder_forward.1} parent=1 // pred_check
      _
    $region3: #{encoder_forward.1} parent=1 // pred_check_branch
      %17 = sbr.rel (0) target = $region5
    $region4: #{encoder_forward.1} parent=1 // pred_region
      _
    $region5: #{encoder_forward.1} parent=1 // pred_fallthru
      _
    // Predicated region
    $region6: #{encoder_forward.1} parent=1 // pred_check
      _
    $region7: #{encoder_forward.1} parent=1 // pred_check_branch
      %19 = sbr.rel (0) target = $region9
    $region8: #{encoder_forward.1} parent=1 // pred_region
      _
    $region9: #{encoder_forward.1} parent=1 // pred_fallthru
      _
    // Predicated region
    $region10: #{encoder_forward.1} parent=1 // pred_check
      _
    $region11: #{encoder_forward.1} parent=1 // pred_check_branch
      %21 = sbr.rel (0) target = $region13
    $region12: #{encoder_forward.1} parent=1 // pred_region
      _
    $region13: #{encoder_forward.1} parent=1 // pred_fallthru
      _
    // Predicated region
    $region14: #{encoder_forward.1} parent=1 // pred_check
      _
    $region15: #{encoder_forward.1} parent=1 // pred_check_branch
      %23 = sbr.rel (0) target = $region17
    $region16: #{encoder_forward.1} parent=1 // pred_region
      _
    $region17: #{encoder_forward.1} parent=1 // pred_fallthru
      _
    // Predicated region
    $region18: #{encoder_forward.1} parent=1 // pred_check
      _
    $region19: #{encoder_forward.1} parent=1 // pred_check_branch
      %25 = sbr.rel (0) target = $region21
    $region20: #{encoder_forward.1} parent=1 // pred_region
      _
    $region21: #{encoder_forward.1} parent=1 // pred_fallthru
      _
    // Predicated region
    $region22: #{encoder_forward.1} parent=1 // pred_check
      _
    $region23: #{encoder_forward.1} parent=1 // pred_check_branch
      %27 = sbr.rel (0) target = $region25
    $region24: #{encoder_forward.1} parent=1 // pred_region
      _
    $region25: #{encoder_forward.1} parent=1 // pred_fallthru
      _
    // Predicated region
    $region26: #{encoder_forward.1} parent=1 // pred_check
      _
    $region27: #{encoder_forward.1} parent=1 // pred_check_branch
      %29 = sbr.rel (0) target = $region29
    $region28: #{encoder_forward.1} parent=1 // pred_region
      _
    $region29: #{encoder_forward.1} parent=1 // pred_fallthru
      _
    %vm31 = vcmask 523264
    %32 = vst.msk [vmem:[#allocation2] sm:$0xff] %vm31, 0.0
    %33 = vst.msk [vmem:[#allocation2 + $0x8] sm:$0xff] %vm31, 0.0
    %34 = vst.msk [vmem:[#allocation2 + $0x10] sm:$0xff] %vm31, 0.0
    %35 = vst.msk [vmem:[#allocation2 + $0x18] sm:$0xff] %vm31, 0.0
    %v36 = vld [vmem:[%s0] ss:$2 sm:$0xff]
    %s37 = scalar_lea.vmem %s0, 16
    %v38 = vld [vmem:[%s37] ss:$2 sm:$0x3f]
    %v39 = vpack.c.bf16 %v38, %v36
    %v40 = vld [vmem:[%s1] sm:$0xf]
    %v41 = vld [vmem:[%s1 + $0x4] sm:$0xf]
    %v42 = vld [vmem:[%s1 + $0x8] sm:$0xf]
    %v43 = vld [vmem:[%s1 + $0xc] sm:$0xf]
    %s44 = scalar_lea.vmem %s0, 1
    %v45 = vld [vmem:[%s44] ss:$2 sm:$0xff]
    %s46 = scalar_lea.vmem %s0, 17
    %v47 = vld [vmem:[%s46] ss:$2 sm:$0x3f]
    %v48 = vpack.c.bf16 %v47, %v45
    %s49 = scalar_lea.vmem %s1, 16
    %v50 = vld [vmem:[%s49] sm:$0xf]
    %v51 = vld [vmem:[%s49 + $0x4] sm:$0xf]
    %v52 = vld [vmem:[%s49 + $0x8] sm:$0xf]
    %v53 = vld [vmem:[%s49 + $0xc] sm:$0xf]
    %v58 = vunpack.c.l.b16 %v50
    %v59 = vunpack.c.l.b16 %v51
    %v60 = vunpack.c.l.b16 %v52
    %v61 = vunpack.c.l.b16 %v53
    %v62 = vpack.c.b16 %v59, %v58
    %v63 = vpack.c.b16 %v61, %v60
    %vm66 = vcmask 261120
    %v68 = vsel %vm66, %v48, 0
    %70 = vmatprep.subr.bf16.mxu0 0
    %71 = vmatpush1.bf16.msra.mxu0 %v62
    %72 = vmatprep.subr.bf16.mxu0 0
    %73 = vmatpush1.bf16.msra.mxu0 %v63
    %74 = vmatprep.subr.bf16.mxu0 0
    %75 = vmatpush1.bf16.msra.mxu0 0
    %76 = vmatprep.subr.bf16.mxu0 0
    %77 = vmatpush1.bf16.msra.mxu0 0
    %78 = vmatprep.subr.bf16.mxu0 0
    %79 = vmatpush1.bf16.msra.mxu0 0
    %80 = vmatprep.subr.bf16.mxu0 0
    %81 = vmatpush1.bf16.msra.mxu0 0
    %82 = vmatprep.subr.bf16.mxu0 0
    %83 = vmatpush1.bf16.msra.mxu0 0
    %84 = vmatprep.subr.bf16.mxu0 0
    %85 = vmatpush1.bf16.msra.mxu0 0
    %86 = vmatprep.subr.bf16.mxu0 0
    %87 = vmatpush1.bf16.msra.mxu0 0
    %88 = vmatprep.subr.bf16.mxu0 0
    %89 = vmatpush1.bf16.msra.mxu0 0
    %90 = vmatprep.subr.bf16.mxu0 0
    %91 = vmatpush1.bf16.msra.mxu0 0
    %92 = vmatprep.subr.bf16.mxu0 0
    %93 = vmatpush1.bf16.msra.mxu0 0
    %94 = vmatprep.subr.bf16.mxu0 0
    %95 = vmatpush1.bf16.msra.mxu0 0
    %96 = vmatprep.subr.bf16.mxu0 0
    %97 = vmatpush1.bf16.msra.mxu0 0
    %98 = vmatprep.subr.bf16.mxu0 0
    %99 = vmatpush1.bf16.msra.mxu0 0
    %100 = vmatprep.subr.bf16.mxu0 0
    %101 = vmatpush1.bf16.msra.mxu0 0
    %102 = vmatprep.mubr.bf16.mxu0 0
    %103 = vmatmul.mubr.bf16.gmra.mrb[0].mxu0 %v68
    %v104 = vpop.f32.mrb[0].mxu0
    %v105 = vadd.f32 0.0, %v104
    %v106 = vpop.f32.mrb[0].mxu0
    %v107 = vpop.f32.mrb[0].mxu0
    %v108 = vadd.f32 0.0, %v107
    %v109 = vpop.f32.mrb[0].mxu0
    %110 = vdwg.mxu0
    %v115 = vunpack.c.l.b16 %v40
    %v116 = vunpack.c.l.b16 %v41
    %v117 = vunpack.c.l.b16 %v42
    %v118 = vunpack.c.l.b16 %v43
    %v119 = vpack.c.b16 %v116, %v115
    %v120 = vpack.c.b16 %v118, %v117
    %v124 = vsel %vm66, %v39, 0
    %126 = vmatprep.subr.bf16.mxu0 0
    %127 = vmatpush1.bf16.msra.mxu0 %v119
    %128 = vmatprep.subr.bf16.mxu0 0
    %129 = vmatpush1.bf16.msra.mxu0 %v120
    %130 = vmatprep.subr.bf16.mxu0 0
    %131 = vmatpush1.bf16.msra.mxu0 0
    %132 = vmatprep.subr.bf16.mxu0 0
    %133 = vmatpush1.bf16.msra.mxu0 0
    %134 = vmatprep.subr.bf16.mxu0 0
    %135 = vmatpush1.bf16.msra.mxu0 0
    %136 = vmatprep.subr.bf16.mxu0 0
    %137 = vmatpush1.bf16.msra.mxu0 0
    %138 = vmatprep.subr.bf16.mxu0 0
    %139 = vmatpush1.bf16.msra.mxu0 0
    %140 = vmatprep.subr.bf16.mxu0 0
    %141 = vmatpush1.bf16.msra.mxu0 0
    %142 = vmatprep.subr.bf16.mxu0 0
    %143 = vmatpush1.bf16.msra.mxu0 0
    %144 = vmatprep.subr.bf16.mxu0 0
    %145 = vmatpush1.bf16.msra.mxu0 0
    %146 = vmatprep.subr.bf16.mxu0 0
    %147 = vmatpush1.bf16.msra.mxu0 0
    %148 = vmatprep.subr.bf16.mxu0 0
    %149 = vmatpush1.bf16.msra.mxu0 0
    %150 = vmatprep.subr.bf16.mxu0 0
    %151 = vmatpush1.bf16.msra.mxu0 0
    %152 = vmatprep.subr.bf16.mxu0 0
    %153 = vmatpush1.bf16.msra.mxu0 0
    %154 = vmatprep.subr.bf16.mxu0 0
    %155 = vmatpush1.bf16.msra.mxu0 0
    %156 = vmatprep.subr.bf16.mxu0 0
    %157 = vmatpush1.bf16.msra.mxu0 0
    %158 = vmatprep.mubr.bf16.mxu0 0
    %159 = vmatmul.mubr.bf16.gmra.mrb[0].mxu0 %v124
    %v160 = vpop.f32.mrb[0].mxu0
    %v161 = vadd.f32 %v105, %v160
    %v162 = vpop.f32.mrb[0].mxu0
    %v163 = vpop.f32.mrb[0].mxu0
    %v164 = vadd.f32 %v108, %v163
    %v165 = vpop.f32.mrb[0].mxu0
    %166 = vdwg.mxu0
    %s167 = scalar_lea.vmem %s0, 2
    %v168 = vld [vmem:[%s167] ss:$2 sm:$0xff]
    %s169 = scalar_lea.vmem %s0, 18
    %v170 = vld [vmem:[%s169] ss:$2 sm:$0x3f]
    %v171 = vpack.c.bf16 %v170, %v168
    %s172 = scalar_lea.vmem %s1, 32
    %v173 = vld [vmem:[%s172] sm:$0xf]
    %v174 = vld [vmem:[%s172 + $0x4] sm:$0xf]
    %v175 = vld [vmem:[%s172 + $0x8] sm:$0xf]
    %v176 = vld [vmem:[%s172 + $0xc] sm:$0xf]
    %v181 = vunpack.c.l.b16 %v173
    %v182 = vunpack.c.l.b16 %v174
    %v183 = vunpack.c.l.b16 %v175
    %v184 = vunpack.c.l.b16 %v176
    %v185 = vpack.c.b16 %v182, %v181
    %v186 = vpack.c.b16 %v184, %v183
    %v190 = vsel %vm66, %v171, 0
    %192 = vmatprep.subr.bf16.mxu0 0
    %193 = vmatpush1.bf16.msra.mxu0 %v185
    %194 = vmatprep.subr.bf16.mxu0 0
    %195 = vmatpush1.bf16.msra.mxu0 %v186
    %196 = vmatprep.subr.bf16.mxu0 0
    %197 = vmatpush1.bf16.msra.mxu0 0
    %198 = vmatprep.subr.bf16.mxu0 0
    %199 = vmatpush1.bf16.msra.mxu0 0
    %200 = vmatprep.subr.bf16.mxu0 0
    %201 = vmatpush1.bf16.msra.mxu0 0
    %202 = vmatprep.subr.bf16.mxu0 0
    %203 = vmatpush1.bf16.msra.mxu0 0
    %204 = vmatprep.subr.bf16.mxu0 0
    %205 = vmatpush1.bf16.msra.mxu0 0
    %206 = vmatprep.subr.bf16.mxu0 0
    %207 = vmatpush1.bf16.msra.mxu0 0
    %208 = vmatprep.subr.bf16.mxu0 0
    %209 = vmatpush1.bf16.msra.mxu0 0
    %210 = vmatprep.subr.bf16.mxu0 0
    %211 = vmatpush1.bf16.msra.mxu0 0
    %212 = vmatprep.subr.bf16.mxu0 0
    %213 = vmatpush1.bf16.msra.mxu0 0
    %214 = vmatprep.subr.bf16.mxu0 0
    %215 = vmatpush1.bf16.msra.mxu0 0
    %216 = vmatprep.subr.bf16.mxu0 0
    %217 = vmatpush1.bf16.msra.mxu0 0
    %218 = vmatprep.subr.bf16.mxu0 0
    %219 = vmatpush1.bf16.msra.mxu0 0
    %220 = vmatprep.subr.bf16.mxu0 0
    %221 = vmatpush1.bf16.msra.mxu0 0
    %222 = vmatprep.subr.bf16.mxu0 0
    %223 = vmatpush1.bf16.msra.mxu0 0
    %224 = vmatprep.mubr.bf16.mxu0 0
    %225 = vmatmul.mubr.bf16.gmra.mrb[0].mxu0 %v190
    %v226 = vpop.f32.mrb[0].mxu0
    %v227 = vadd.f32 0.0, %v226
    %v228 = vpop.f32.mrb[0].mxu0
    %v229 = vpop.f32.mrb[0].mxu0
    %v230 = vadd.f32 0.0, %v229
    %v231 = vpop.f32.mrb[0].mxu0
    %232 = vdwg.mxu0
    %v233 = vadd.f32 %v161, %v227
    %v234 = vadd.f32 %v164, %v230
    %s235 = scalar_lea.vmem %s0, 3
    %v236 = vld [vmem:[%s235] ss:$2 sm:$0xff]
    %s237 = scalar_lea.vmem %s0, 19
    %v238 = vld [vmem:[%s237] ss:$2 sm:$0x3f]
    %v239 = vpack.c.bf16 %v238, %v236
    %s240 = scalar_lea.vmem %s1, 48
    %v241 = vld [vmem:[%s240] sm:$0xf]
    %v242 = vld [vmem:[%s240 + $0x4] sm:$0xf]
    %v243 = vld [vmem:[%s240 + $0x8] sm:$0xf]
    %v244 = vld [vmem:[%s240 + $0xc] sm:$0xf]
    %v249 = vunpack.c.l.b16 %v241
    %v250 = vunpack.c.l.b16 %v242
    %v251 = vunpack.c.l.b16 %v243
    %v252 = vunpack.c.l.b16 %v244
    %v253 = vpack.c.b16 %v250, %v249
    %v254 = vpack.c.b16 %v252, %v251
    %v258 = vsel %vm66, %v239, 0
    %260 = vmatprep.subr.bf16.mxu0 0
    %261 = vmatpush1.bf16.msra.mxu0 %v253
    %262 = vmatprep.subr.bf16.mxu0 0
    %263 = vmatpush1.bf16.msra.mxu0 %v254
    %264 = vmatprep.subr.bf16.mxu0 0
    %265 = vmatpush1.bf16.msra.mxu0 0
    %266 = vmatprep.subr.bf16.mxu0 0
    %267 = vmatpush1.bf16.msra.mxu0 0
    %268 = vmatprep.subr.bf16.mxu0 0
    %269 = vmatpush1.bf16.msra.mxu0 0
    %270 = vmatprep.subr.bf16.mxu0 0
    %271 = vmatpush1.bf16.msra.mxu0 0
    %272 = vmatprep.subr.bf16.mxu0 0
    %273 = vmatpush1.bf16.msra.mxu0 0
    %274 = vmatprep.subr.bf16.mxu0 0
    %275 = vmatpush1.bf16.msra.mxu0 0
    %276 = vmatprep.subr.bf16.mxu0 0
    %277 = vmatpush1.bf16.msra.mxu0 0
    %278 = vmatprep.subr.bf16.mxu0 0
    %279 = vmatpush1.bf16.msra.mxu0 0
    %280 = vmatprep.subr.bf16.mxu0 0
    %281 = vmatpush1.bf16.msra.mxu0 0
    %282 = vmatprep.subr.bf16.mxu0 0
    %283 = vmatpush1.bf16.msra.mxu0 0
    %284 = vmatprep.subr.bf16.mxu0 0
    %285 = vmatpush1.bf16.msra.mxu0 0
    %286 = vmatprep.subr.bf16.mxu0 0
    %287 = vmatpush1.bf16.msra.mxu0 0
    %288 = vmatprep.subr.bf16.mxu0 0
    %289 = vmatpush1.bf16.msra.mxu0 0
    %290 = vmatprep.subr.bf16.mxu0 0
    %291 = vmatpush1.bf16.msra.mxu0 0
    %292 = vmatprep.mubr.bf16.mxu0 0
    %293 = vmatmul.mubr.bf16.gmra.mrb[0].mxu0 %v258
    %v294 = vpop.f32.mrb[0].mxu0
    %v295 = vadd.f32 0.0, %v294
    %v296 = vpop.f32.mrb[0].mxu0
    %v297 = vpop.f32.mrb[0].mxu0
    %v298 = vadd.f32 0.0, %v297
    %v299 = vpop.f32.mrb[0].mxu0
    %300 = vdwg.mxu0
    %v301 = vadd.f32 %v233, %v295
    %v302 = vadd.f32 %v234, %v298
    %v303 = vld [vmem:[%s2] sm:$0x1]
    %v305 = vlaneseq
    %v306 = vshrl.u32 %v305, 7
    %v307 = vsub.s32 0, %v306
    %v308 = vrot.slane %v303, %v307
    %v310 = vadd.f32 %v301, %v308
    %v311 = vadd.f32 %v302, %v308
    %v312 = vmax.f32 %v310, 0.0
    %v313 = vmax.f32 %v311, 0.0
    %316 = vrot.lane.b32.xlu0 %v312, 4
    %v317 = vpop.permute.xlu0 %316
    %318 = vrot.lane.b32.xlu0 %v313, 4
    %v319 = vpop.permute.xlu0 %318
    %vm322 = vcmask 490528
    %323 = vst.msk [vmem:[#allocation2 + $0x1] sm:$0xff] %vm322, %v317
    %vm324 = vcmask 488480
    %325 = vst.msk [vmem:[#allocation2 + $0x9] sm:$0x3f] %vm324, %v319
    %s326 = scalar_lea.vmem %s0, 32
    %v327 = vld [vmem:[%s326] ss:$2 sm:$0xff]
    %s328 = scalar_lea.vmem %s0, 48
    %v329 = vld [vmem:[%s328] ss:$2 sm:$0x3f]
    %v330 = vpack.c.bf16 %v329, %v327
    %v331 = vld [vmem:[%s1] sm:$0xf]
    %v332 = vld [vmem:[%s1 + $0x4] sm:$0xf]
    %v333 = vld [vmem:[%s1 + $0x8] sm:$0xf]
    %v334 = vld [vmem:[%s1 + $0xc] sm:$0xf]
    %s335 = scalar_lea.vmem %s0, 33
    %v336 = vld [vmem:[%s335] ss:$2 sm:$0xff]
    %s337 = scalar_lea.vmem %s0, 49
    %v338 = vld [vmem:[%s337] ss:$2 sm:$0x3f]
    %v339 = vpack.c.bf16 %v338, %v336
    %v340 = vld [vmem:[%s49] sm:$0xf]
    %v341 = vld [vmem:[%s49 + $0x4] sm:$0xf]
    %v342 = vld [vmem:[%s49 + $0x8] sm:$0xf]
    %v343 = vld [vmem:[%s49 + $0xc] sm:$0xf]
    %v348 = vunpack.c.l.b16 %v340
    %v349 = vunpack.c.l.b16 %v341
    %v350 = vunpack.c.l.b16 %v342
    %v351 = vunpack.c.l.b16 %v343
    %v352 = vpack.c.b16 %v349, %v348
    %v353 = vpack.c.b16 %v351, %v350
    %v357 = vsel %vm66, %v339, 0
    %359 = vmatprep.subr.bf16.mxu0 0
    %360 = vmatpush1.bf16.msra.mxu0 %v352
    %361 = vmatprep.subr.bf16.mxu0 0
    %362 = vmatpush1.bf16.msra.mxu0 %v353
    %363 = vmatprep.subr.bf16.mxu0 0
    %364 = vmatpush1.bf16.msra.mxu0 0
    %365 = vmatprep.subr.bf16.mxu0 0
    %366 = vmatpush1.bf16.msra.mxu0 0
    %367 = vmatprep.subr.bf16.mxu0 0
    %368 = vmatpush1.bf16.msra.mxu0 0
    %369 = vmatprep.subr.bf16.mxu0 0
    %370 = vmatpush1.bf16.msra.mxu0 0
    %371 = vmatprep.subr.bf16.mxu0 0
    %372 = vmatpush1.bf16.msra.mxu0 0
    %373 = vmatprep.subr.bf16.mxu0 0
    %374 = vmatpush1.bf16.msra.mxu0 0
    %375 = vmatprep.subr.bf16.mxu0 0
    %376 = vmatpush1.bf16.msra.mxu0 0
    %377 = vmatprep.subr.bf16.mxu0 0
    %378 = vmatpush1.bf16.msra.mxu0 0
    %379 = vmatprep.subr.bf16.mxu0 0
    %380 = vmatpush1.bf16.msra.mxu0 0
    %381 = vmatprep.subr.bf16.mxu0 0
    %382 = vmatpush1.bf16.msra.mxu0 0
    %383 = vmatprep.subr.bf16.mxu0 0
    %384 = vmatpush1.bf16.msra.mxu0 0
    %385 = vmatprep.subr.bf16.mxu0 0
    %386 = vmatpush1.bf16.msra.mxu0 0
    %387 = vmatprep.subr.bf16.mxu0 0
    %388 = vmatpush1.bf16.msra.mxu0 0
    %389 = vmatprep.subr.bf16.mxu0 0
    %390 = vmatpush1.bf16.msra.mxu0 0
    %391 = vmatprep.mubr.bf16.mxu0 0
    %392 = vmatmul.mubr.bf16.gmra.mrb[0].mxu0 %v357
    %v393 = vpop.f32.mrb[0].mxu0
    %v394 = vadd.f32 0.0, %v393
    %v395 = vpop.f32.mrb[0].mxu0
    %v396 = vpop.f32.mrb[0].mxu0
    %v397 = vadd.f32 0.0, %v396
    %v398 = vpop.f32.mrb[0].mxu0
    %399 = vdwg.mxu0
    %v404 = vunpack.c.l.b16 %v331
    %v405 = vunpack.c.l.b16 %v332
    %v406 = vunpack.c.l.b16 %v333
    %v407 = vunpack.c.l.b16 %v334
    %v408 = vpack.c.b16 %v405, %v404
    %v409 = vpack.c.b16 %v407, %v406
    %v413 = vsel %vm66, %v330, 0
    %415 = vmatprep.subr.bf16.mxu0 0
    %416 = vmatpush1.bf16.msra.mxu0 %v408
    %417 = vmatprep.subr.bf16.mxu0 0
    %418 = vmatpush1.bf16.msra.mxu0 %v409
    %419 = vmatprep.subr.bf16.mxu0 0
    %420 = vmatpush1.bf16.msra.mxu0 0
    %421 = vmatprep.subr.bf16.mxu0 0
    %422 = vmatpush1.bf16.msra.mxu0 0
    %423 = vmatprep.subr.bf16.mxu0 0
    %424 = vmatpush1.bf16.msra.mxu0 0
    %425 = vmatprep.subr.bf16.mxu0 0
    %426 = vmatpush1.bf16.msra.mxu0 0
    %427 = vmatprep.subr.bf16.mxu0 0
    %428 = vmatpush1.bf16.msra.mxu0 0
    %429 = vmatprep.subr.bf16.mxu0 0
    %430 = vmatpush1.bf16.msra.mxu0 0
    %431 = vmatprep.subr.bf16.mxu0 0
    %432 = vmatpush1.bf16.msra.mxu0 0
    %433 = vmatprep.subr.bf16.mxu0 0
    %434 = vmatpush1.bf16.msra.mxu0 0
    %435 = vmatprep.subr.bf16.mxu0 0
    %436 = vmatpush1.bf16.msra.mxu0 0
    %437 = vmatprep.subr.bf16.mxu0 0
    %438 = vmatpush1.bf16.msra.mxu0 0
    %439 = vmatprep.subr.bf16.mxu0 0
    %440 = vmatpush1.bf16.msra.mxu0 0
    %441 = vmatprep.subr.bf16.mxu0 0
    %442 = vmatpush1.bf16.msra.mxu0 0
    %443 = vmatprep.subr.bf16.mxu0 0
    %444 = vmatpush1.bf16.msra.mxu0 0
    %445 = vmatprep.subr.bf16.mxu0 0
    %446 = vmatpush1.bf16.msra.mxu0 0
    %447 = vmatprep.mubr.bf16.mxu0 0
    %448 = vmatmul.mubr.bf16.gmra.mrb[0].mxu0 %v413
    %v449 = vpop.f32.mrb[0].mxu0
    %v450 = vadd.f32 %v394, %v449
    %v451 = vpop.f32.mrb[0].mxu0
    %v452 = vpop.f32.mrb[0].mxu0
    %v453 = vadd.f32 %v397, %v452
    %v454 = vpop.f32.mrb[0].mxu0
    %455 = vdwg.mxu0
    %s456 = scalar_lea.vmem %s0, 34
    %v457 = vld [vmem:[%s456] ss:$2 sm:$0xff]
    %s458 = scalar_lea.vmem %s0, 50
    %v459 = vld [vmem:[%s458] ss:$2 sm:$0x3f]
    %v460 = vpack.c.bf16 %v459, %v457
    %v461 = vld [vmem:[%s172] sm:$0xf]
    %v462 = vld [vmem:[%s172 + $0x4] sm:$0xf]
    %v463 = vld [vmem:[%s172 + $0x8] sm:$0xf]
    %v464 = vld [vmem:[%s172 + $0xc] sm:$0xf]
    %v469 = vunpack.c.l.b16 %v461
    %v470 = vunpack.c.l.b16 %v462
    %v471 = vunpack.c.l.b16 %v463
    %v472 = vunpack.c.l.b16 %v464
    %v473 = vpack.c.b16 %v470, %v469
    %v474 = vpack.c.b16 %v472, %v471
    %v478 = vsel %vm66, %v460, 0
    %480 = vmatprep.subr.bf16.mxu0 0
    %481 = vmatpush1.bf16.msra.mxu0 %v473
    %482 = vmatprep.subr.bf16.mxu0 0
    %483 = vmatpush1.bf16.msra.mxu0 %v474
    %484 = vmatprep.subr.bf16.mxu0 0
    %485 = vmatpush1.bf16.msra.mxu0 0
    %486 = vmatprep.subr.bf16.mxu0 0
    %487 = vmatpush1.bf16.msra.mxu0 0
    %488 = vmatprep.subr.bf16.mxu0 0
    %489 = vmatpush1.bf16.msra.mxu0 0
    %490 = vmatprep.subr.bf16.mxu0 0
    %491 = vmatpush1.bf16.msra.mxu0 0
    %492 = vmatprep.subr.bf16.mxu0 0
    %493 = vmatpush1.bf16.msra.mxu0 0
    %494 = vmatprep.subr.bf16.mxu0 0
    %495 = vmatpush1.bf16.msra.mxu0 0
    %496 = vmatprep.subr.bf16.mxu0 0
    %497 = vmatpush1.bf16.msra.mxu0 0
    %498 = vmatprep.subr.bf16.mxu0 0
    %499 = vmatpush1.bf16.msra.mxu0 0
    %500 = vmatprep.subr.bf16.mxu0 0
    %501 = vmatpush1.bf16.msra.mxu0 0
    %502 = vmatprep.subr.bf16.mxu0 0
    %503 = vmatpush1.bf16.msra.mxu0 0
    %504 = vmatprep.subr.bf16.mxu0 0
    %505 = vmatpush1.bf16.msra.mxu0 0
    %506 = vmatprep.subr.bf16.mxu0 0
    %507 = vmatpush1.bf16.msra.mxu0 0
    %508 = vmatprep.subr.bf16.mxu0 0
    %509 = vmatpush1.bf16.msra.mxu0 0
    %510 = vmatprep.subr.bf16.mxu0 0
    %511 = vmatpush1.bf16.msra.mxu0 0
    %512 = vmatprep.mubr.bf16.mxu0 0
    %513 = vmatmul.mubr.bf16.gmra.mrb[0].mxu0 %v478
    %v514 = vpop.f32.mrb[0].mxu0
    %v515 = vadd.f32 0.0, %v514
    %v516 = vpop.f32.mrb[0].mxu0
    %v517 = vpop.f32.mrb[0].mxu0
    %v518 = vadd.f32 0.0, %v517
    %v519 = vpop.f32.mrb[0].mxu0
    %520 = vdwg.mxu0
    %v521 = vadd.f32 %v450, %v515
    %v522 = vadd.f32 %v453, %v518
    %s523 = scalar_lea.vmem %s0, 35
    %v524 = vld [vmem:[%s523] ss:$2 sm:$0xff]
    %s525 = scalar_lea.vmem %s0, 51
    %v526 = vld [vmem:[%s525] ss:$2 sm:$0x3f]
    %v527 = vpack.c.bf16 %v526, %v524
    %v528 = vld [vmem:[%s240] sm:$0xf]
    %v529 = vld [vmem:[%s240 + $0x4] sm:$0xf]
    %v530 = vld [vmem:[%s240 + $0x8] sm:$0xf]
    %v531 = vld [vmem:[%s240 + $0xc] sm:$0xf]
    %v536 = vunpack.c.l.b16 %v528
    %v537 = vunpack.c.l.b16 %v529
    %v538 = vunpack.c.l.b16 %v530
    %v539 = vunpack.c.l.b16 %v531
    %v540 = vpack.c.b16 %v537, %v536
    %v541 = vpack.c.b16 %v539, %v538
    %v545 = vsel %vm66, %v527, 0
    %547 = vmatprep.subr.bf16.mxu0 0
    %548 = vmatpush1.bf16.msra.mxu0 %v540
    %549 = vmatprep.subr.bf16.mxu0 0
    %550 = vmatpush1.bf16.msra.mxu0 %v541
    %551 = vmatprep.subr.bf16.mxu0 0
    %552 = vmatpush1.bf16.msra.mxu0 0
    %553 = vmatprep.subr.bf16.mxu0 0
    %554 = vmatpush1.bf16.msra.mxu0 0
    %555 = vmatprep.subr.bf16.mxu0 0
    %556 = vmatpush1.bf16.msra.mxu0 0
    %557 = vmatprep.subr.bf16.mxu0 0
    %558 = vmatpush1.bf16.msra.mxu0 0
    %559 = vmatprep.subr.bf16.mxu0 0
    %560 = vmatpush1.bf16.msra.mxu0 0
    %561 = vmatprep.subr.bf16.mxu0 0
    %562 = vmatpush1.bf16.msra.mxu0 0
    %563 = vmatprep.subr.bf16.mxu0 0
    %564 = vmatpush1.bf16.msra.mxu0 0
    %565 = vmatprep.subr.bf16.mxu0 0
    %566 = vmatpush1.bf16.msra.mxu0 0
    %567 = vmatprep.subr.bf16.mxu0 0
    %568 = vmatpush1.bf16.msra.mxu0 0
    %569 = vmatprep.subr.bf16.mxu0 0
    %570 = vmatpush1.bf16.msra.mxu0 0
    %571 = vmatprep.subr.bf16.mxu0 0
    %572 = vmatpush1.bf16.msra.mxu0 0
    %573 = vmatprep.subr.bf16.mxu0 0
    %574 = vmatpush1.bf16.msra.mxu0 0
    %575 = vmatprep.subr.bf16.mxu0 0
    %576 = vmatpush1.bf16.msra.mxu0 0
    %577 = vmatprep.subr.bf16.mxu0 0
    %578 = vmatpush1.bf16.msra.mxu0 0
    %579 = vmatprep.mubr.bf16.mxu0 0
    %580 = vmatmul.mubr.bf16.gmra.mrb[0].mxu0 %v545
    %v581 = vpop.f32.mrb[0].mxu0
    %v582 = vadd.f32 0.0, %v581
    %v583 = vpop.f32.mrb[0].mxu0
    %v584 = vpop.f32.mrb[0].mxu0
    %v585 = vadd.f32 0.0, %v584
    %v586 = vpop.f32.mrb[0].mxu0
    %587 = vdwg.mxu0
    %v588 = vadd.f32 %v521, %v582
    %v589 = vadd.f32 %v522, %v585
    %v590 = vld [vmem:[%s2] sm:$0x1]
    %v592 = vlaneseq
    %v593 = vshrl.u32 %v592, 7
    %v594 = vsub.s32 0, %v593
    %v595 = vrot.slane %v590, %v594
    %v597 = vadd.f32 %v588, %v595
    %v598 = vadd.f32 %v589, %v595
    %v599 = vmax.f32 %v597, 0.0
    %v600 = vmax.f32 %v598, 0.0
    %603 = vrot.lane.b32.xlu0 %v599, 4
    %v604 = vpop.permute.xlu0 %603
    %605 = vrot.lane.b32.xlu0 %v600, 4
    %v606 = vpop.permute.xlu0 %605
    %609 = vst.msk [vmem:[#allocation2 + $0x11] sm:$0xff] %vm322, %v604
    %610 = vst.msk [vmem:[#allocation2 + $0x19] sm:$0x3f] %vm324, %v606
    %v611 = vld [vmem:[#allocation2] ss:$2 sm:$0x7f]
    %v612 = vpack.c.bf16 %v611, %v611
    %v613 = vld [vmem:[%s3] sm:$0xf]
    %v614 = vld [vmem:[%s3 + $0x4] sm:$0xf]
    %v615 = vld [vmem:[%s3 + $0x8] sm:$0xf]
    %v616 = vld [vmem:[%s3 + $0xc] sm:$0xf]
    %v617 = vld [vmem:[%s3 + $0x10] sm:$0xf]
    %v618 = vld [vmem:[%s3 + $0x14] sm:$0xf]
    %v619 = vld [vmem:[%s3 + $0x18] sm:$0xf]
    %v620 = vld [vmem:[%s3 + $0x1c] sm:$0xf]
    %s621 = scalar_lea.vmem [#allocation2], 1
    %v622 = vld [vmem:[%s621] ss:$2 sm:$0x7f]
    %v623 = vpack.c.bf16 %v622, %v622
    %s624 = scalar_lea.vmem %s3, 32
    %v625 = vld [vmem:[%s624] sm:$0xf]
    %v626 = vld [vmem:[%s624 + $0x4] sm:$0xf]
    %v627 = vld [vmem:[%s624 + $0x8] sm:$0xf]
    %v628 = vld [vmem:[%s624 + $0xc] sm:$0xf]
    %v629 = vld [vmem:[%s624 + $0x10] sm:$0xf]
    %v630 = vld [vmem:[%s624 + $0x14] sm:$0xf]
    %v631 = vld [vmem:[%s624 + $0x18] sm:$0xf]
    %v632 = vld [vmem:[%s624 + $0x1c] sm:$0xf]
    %v641 = vunpack.c.l.b16 %v625
    %v642 = vunpack.c.l.b16 %v626
    %v643 = vunpack.c.l.b16 %v627
    %v644 = vunpack.c.l.b16 %v628
    %v645 = vunpack.c.l.b16 %v629
    %v646 = vunpack.c.l.b16 %v630
    %v647 = vunpack.c.l.b16 %v631
    %v648 = vunpack.c.l.b16 %v632
    %v649 = vpack.c.b16 %v642, %v641
    %v650 = vpack.c.b16 %v644, %v643
    %v651 = vpack.c.b16 %v646, %v645
    %v652 = vpack.c.b16 %v648, %v647
    %v658 = vsel %vm31, %v623, 0
    %660 = vmatprep.subr.bf16.mxu0 0
    %661 = vmatpush1.bf16.msra.mxu0 %v649
    %662 = vmatprep.subr.bf16.mxu0 0
    %663 = vmatpush1.bf16.msra.mxu0 %v650
    %664 = vmatprep.subr.bf16.mxu0 0
    %665 = vmatpush1.bf16.msra.mxu0 %v651
    %666 = vmatprep.subr.bf16.mxu0 0
    %667 = vmatpush1.bf16.msra.mxu0 %v652
    %668 = vmatprep.subr.bf16.mxu0 0
    %669 = vmatpush1.bf16.msra.mxu0 0
    %670 = vmatprep.subr.bf16.mxu0 0
    %671 = vmatpush1.bf16.msra.mxu0 0
    %672 = vmatprep.subr.bf16.mxu0 0
    %673 = vmatpush1.bf16.msra.mxu0 0
    %674 = vmatprep.subr.bf16.mxu0 0
    %675 = vmatpush1.bf16.msra.mxu0 0
    %676 = vmatprep.subr.bf16.mxu0 0
    %677 = vmatpush1.bf16.msra.mxu0 0
    %678 = vmatprep.subr.bf16.mxu0 0
    %679 = vmatpush1.bf16.msra.mxu0 0
    %680 = vmatprep.subr.bf16.mxu0 0
    %681 = vmatpush1.bf16.msra.mxu0 0
    %682 = vmatprep.subr.bf16.mxu0 0
    %683 = vmatpush1.bf16.msra.mxu0 0
    %684 = vmatprep.subr.bf16.mxu0 0
    %685 = vmatpush1.bf16.msra.mxu0 0
    %686 = vmatprep.subr.bf16.mxu0 0
    %687 = vmatpush1.bf16.msra.mxu0 0
    %688 = vmatprep.subr.bf16.mxu0 0
    %689 = vmatpush1.bf16.msra.mxu0 0
    %690 = vmatprep.subr.bf16.mxu0 0
    %691 = vmatpush1.bf16.msra.mxu0 0
    %692 = vmatprep.mubr.bf16.mxu0 0
    %693 = vmatmul.mubr.bf16.gmra.mrb[0].mxu0 %v658
    %v694 = vpop.f32.mrb[0].mxu0
    %v695 = vadd.f32 0.0, %v694
    %v696 = vpop.f32.mrb[0].mxu0
    %v697 = vpop.f32.mrb[0].mxu0
    %v698 = vpop.f32.mrb[0].mxu0
    %699 = vdwg.mxu0
    %v708 = vunpack.c.l.b16 %v613
    %v709 = vunpack.c.l.b16 %v614
    %v710 = vunpack.c.l.b16 %v615
    %v711 = vunpack.c.l.b16 %v616
    %v712 = vunpack.c.l.b16 %v617
    %v713 = vunpack.c.l.b16 %v618
    %v714 = vunpack.c.l.b16 %v619
    %v715 = vunpack.c.l.b16 %v620
    %v716 = vpack.c.b16 %v709, %v708
    %v717 = vpack.c.b16 %v711, %v710
    %v718 = vpack.c.b16 %v713, %v712
    %v719 = vpack.c.b16 %v715, %v714
    %v725 = vsel %vm31, %v612, 0
    %727 = vmatprep.subr.bf16.mxu0 0
    %728 = vmatpush1.bf16.msra.mxu0 %v716
    %729 = vmatprep.subr.bf16.mxu0 0
    %730 = vmatpush1.bf16.msra.mxu0 %v717
    %731 = vmatprep.subr.bf16.mxu0 0
    %732 = vmatpush1.bf16.msra.mxu0 %v718
    %733 = vmatprep.subr.bf16.mxu0 0
    %734 = vmatpush1.bf16.msra.mxu0 %v719
    %735 = vmatprep.subr.bf16.mxu0 0
    %736 = vmatpush1.bf16.msra.mxu0 0
    %737 = vmatprep.subr.bf16.mxu0 0
    %738 = vmatpush1.bf16.msra.mxu0 0
    %739 = vmatprep.subr.bf16.mxu0 0
    %740 = vmatpush1.bf16.msra.mxu0 0
    %741 = vmatprep.subr.bf16.mxu0 0
    %742 = vmatpush1.bf16.msra.mxu0 0
    %743 = vmatprep.subr.bf16.mxu0 0
    %744 = vmatpush1.bf16.msra.mxu0 0
    %745 = vmatprep.subr.bf16.mxu0 0
    %746 = vmatpush1.bf16.msra.mxu0 0
    %747 = vmatprep.subr.bf16.mxu0 0
    %748 = vmatpush1.bf16.msra.mxu0 0
    %749 = vmatprep.subr.bf16.mxu0 0
    %750 = vmatpush1.bf16.msra.mxu0 0
    %751 = vmatprep.subr.bf16.mxu0 0
    %752 = vmatpush1.bf16.msra.mxu0 0
    %753 = vmatprep.subr.bf16.mxu0 0
    %754 = vmatpush1.bf16.msra.mxu0 0
    %755 = vmatprep.subr.bf16.mxu0 0
    %756 = vmatpush1.bf16.msra.mxu0 0
    %757 = vmatprep.subr.bf16.mxu0 0
    %758 = vmatpush1.bf16.msra.mxu0 0
    %759 = vmatprep.mubr.bf16.mxu0 0
    %760 = vmatmul.mubr.bf16.gmra.mrb[0].mxu0 %v725
    %v761 = vpop.f32.mrb[0].mxu0
    %v762 = vadd.f32 %v695, %v761
    %v763 = vpop.f32.mrb[0].mxu0
    %v764 = vpop.f32.mrb[0].mxu0
    %v765 = vpop.f32.mrb[0].mxu0
    %766 = vdwg.mxu0
    %s767 = scalar_lea.vmem [#allocation2], 2
    %v768 = vld [vmem:[%s767] ss:$2 sm:$0x7f]
    %v769 = vpack.c.bf16 %v768, %v768
    %s770 = scalar_lea.vmem %s3, 64
    %v771 = vld [vmem:[%s770] sm:$0xf]
    %v772 = vld [vmem:[%s770 + $0x4] sm:$0xf]
    %v773 = vld [vmem:[%s770 + $0x8] sm:$0xf]
    %v774 = vld [vmem:[%s770 + $0xc] sm:$0xf]
    %v775 = vld [vmem:[%s770 + $0x10] sm:$0xf]
    %v776 = vld [vmem:[%s770 + $0x14] sm:$0xf]
    %v777 = vld [vmem:[%s770 + $0x18] sm:$0xf]
    %v778 = vld [vmem:[%s770 + $0x1c] sm:$0xf]
    %v787 = vunpack.c.l.b16 %v771
    %v788 = vunpack.c.l.b16 %v772
    %v789 = vunpack.c.l.b16 %v773
    %v790 = vunpack.c.l.b16 %v774
    %v791 = vunpack.c.l.b16 %v775
    %v792 = vunpack.c.l.b16 %v776
    %v793 = vunpack.c.l.b16 %v777
    %v794 = vunpack.c.l.b16 %v778
    %v795 = vpack.c.b16 %v788, %v787
    %v796 = vpack.c.b16 %v790, %v789
    %v797 = vpack.c.b16 %v792, %v791
    %v798 = vpack.c.b16 %v794, %v793
    %v804 = vsel %vm31, %v769, 0
    %806 = vmatprep.subr.bf16.mxu0 0
    %807 = vmatpush1.bf16.msra.mxu0 %v795
    %808 = vmatprep.subr.bf16.mxu0 0
    %809 = vmatpush1.bf16.msra.mxu0 %v796
    %810 = vmatprep.subr.bf16.mxu0 0
    %811 = vmatpush1.bf16.msra.mxu0 %v797
    %812 = vmatprep.subr.bf16.mxu0 0
    %813 = vmatpush1.bf16.msra.mxu0 %v798
    %814 = vmatprep.subr.bf16.mxu0 0
    %815 = vmatpush1.bf16.msra.mxu0 0
    %816 = vmatprep.subr.bf16.mxu0 0
    %817 = vmatpush1.bf16.msra.mxu0 0
    %818 = vmatprep.subr.bf16.mxu0 0
    %819 = vmatpush1.bf16.msra.mxu0 0
    %820 = vmatprep.subr.bf16.mxu0 0
    %821 = vmatpush1.bf16.msra.mxu0 0
    %822 = vmatprep.subr.bf16.mxu0 0
    %823 = vmatpush1.bf16.msra.mxu0 0
    %824 = vmatprep.subr.bf16.mxu0 0
    %825 = vmatpush1.bf16.msra.mxu0 0
    %826 = vmatprep.subr.bf16.mxu0 0
    %827 = vmatpush1.bf16.msra.mxu0 0
    %828 = vmatprep.subr.bf16.mxu0 0
    %829 = vmatpush1.bf16.msra.mxu0 0
    %830 = vmatprep.subr.bf16.mxu0 0
    %831 = vmatpush1.bf16.msra.mxu0 0
    %832 = vmatprep.subr.bf16.mxu0 0
    %833 = vmatpush1.bf16.msra.mxu0 0
    %834 = vmatprep.subr.bf16.mxu0 0
    %835 = vmatpush1.bf16.msra.mxu0 0
    %836 = vmatprep.subr.bf16.mxu0 0
    %837 = vmatpush1.bf16.msra.mxu0 0
    %838 = vmatprep.mubr.bf16.mxu0 0
    %839 = vmatmul.mubr.bf16.gmra.mrb[0].mxu0 %v804
    %v840 = vpop.f32.mrb[0].mxu0
    %v841 = vadd.f32 0.0, %v840
    %v842 = vpop.f32.mrb[0].mxu0
    %v843 = vpop.f32.mrb[0].mxu0
    %v844 = vpop.f32.mrb[0].mxu0
    %845 = vdwg.mxu0
    %v846 = vadd.f32 %v762, %v841
    %s847 = scalar_lea.vmem [#allocation2], 3
    %v848 = vld [vmem:[%s847] ss:$2 sm:$0x7f]
    %v849 = vpack.c.bf16 %v848, %v848
    %s850 = scalar_lea.vmem %s3, 96
    %v851 = vld [vmem:[%s850] sm:$0xf]
    %v852 = vld [vmem:[%s850 + $0x4] sm:$0xf]
    %v853 = vld [vmem:[%s850 + $0x8] sm:$0xf]
    %v854 = vld [vmem:[%s850 + $0xc] sm:$0xf]
    %v855 = vld [vmem:[%s850 + $0x10] sm:$0xf]
    %v856 = vld [vmem:[%s850 + $0x14] sm:$0xf]
    %v857 = vld [vmem:[%s850 + $0x18] sm:$0xf]
    %v858 = vld [vmem:[%s850 + $0x1c] sm:$0xf]
    %v867 = vunpack.c.l.b16 %v851
    %v868 = vunpack.c.l.b16 %v852
    %v869 = vunpack.c.l.b16 %v853
    %v870 = vunpack.c.l.b16 %v854
    %v871 = vunpack.c.l.b16 %v855
    %v872 = vunpack.c.l.b16 %v856
    %v873 = vunpack.c.l.b16 %v857
    %v874 = vunpack.c.l.b16 %v858
    %v875 = vpack.c.b16 %v868, %v867
    %v876 = vpack.c.b16 %v870, %v869
    %v877 = vpack.c.b16 %v872, %v871
    %v878 = vpack.c.b16 %v874, %v873
    %v884 = vsel %vm31, %v849, 0
    %886 = vmatprep.subr.bf16.mxu0 0
    %887 = vmatpush1.bf16.msra.mxu0 %v875
    %888 = vmatprep.subr.bf16.mxu0 0
    %889 = vmatpush1.bf16.msra.mxu0 %v876
    %890 = vmatprep.subr.bf16.mxu0 0
    %891 = vmatpush1.bf16.msra.mxu0 %v877
    %892 = vmatprep.subr.bf16.mxu0 0
    %893 = vmatpush1.bf16.msra.mxu0 %v878
    %894 = vmatprep.subr.bf16.mxu0 0
    %895 = vmatpush1.bf16.msra.mxu0 0
    %896 = vmatprep.subr.bf16.mxu0 0
    %897 = vmatpush1.bf16.msra.mxu0 0
    %898 = vmatprep.subr.bf16.mxu0 0
    %899 = vmatpush1.bf16.msra.mxu0 0
    %900 = vmatprep.subr.bf16.mxu0 0
    %901 = vmatpush1.bf16.msra.mxu0 0
    %902 = vmatprep.subr.bf16.mxu0 0
    %903 = vmatpush1.bf16.msra.mxu0 0
    %904 = vmatprep.subr.bf16.mxu0 0
    %905 = vmatpush1.bf16.msra.mxu0 0
    %906 = vmatprep.subr.bf16.mxu0 0
    %907 = vmatpush1.bf16.msra.mxu0 0
    %908 = vmatprep.subr.bf16.mxu0 0
    %909 = vmatpush1.bf16.msra.mxu0 0
    %910 = vmatprep.subr.bf16.mxu0 0
    %911 = vmatpush1.bf16.msra.mxu0 0
    %912 = vmatprep.subr.bf16.mxu0 0
    %913 = vmatpush1.bf16.msra.mxu0 0
    %914 = vmatprep.subr.bf16.mxu0 0
    %915 = vmatpush1.bf16.msra.mxu0 0
    %916 = vmatprep.subr.bf16.mxu0 0
    %917 = vmatpush1.bf16.msra.mxu0 0
    %918 = vmatprep.mubr.bf16.mxu0 0
    %919 = vmatmul.mubr.bf16.gmra.mrb[0].mxu0 %v884
    %v920 = vpop.f32.mrb[0].mxu0
    %v921 = vadd.f32 0.0, %v920
    %v922 = vpop.f32.mrb[0].mxu0
    %v923 = vpop.f32.mrb[0].mxu0
    %v924 = vpop.f32.mrb[0].mxu0
    %925 = vdwg.mxu0
    %v926 = vadd.f32 %v846, %v921
    %v927 = vld [vmem:[%s4] sm:$0x1]
    %v929 = vlaneseq
    %v930 = vshrl.u32 %v929, 7
    %v931 = vsub.s32 0, %v930
    %v932 = vrot.slane %v927, %v931
    %v934 = vadd.f32 %v926, %v932
    %v935 = vmax.f32 %v934, 0.0
    %vm936 = vcmask 456704
    %937 = vst.msk [vmem:[#allocation3] sm:$0x7f] %vm936, %v935
    %s938 = scalar_lea.vmem [#allocation2], 16
    %v939 = vld [vmem:[%s938] ss:$2 sm:$0x7f]
    %v940 = vpack.c.bf16 %v939, %v939
    %v941 = vld [vmem:[%s3] sm:$0xf]
    %v942 = vld [vmem:[%s3 + $0x4] sm:$0xf]
    %v943 = vld [vmem:[%s3 + $0x8] sm:$0xf]
    %v944 = vld [vmem:[%s3 + $0xc] sm:$0xf]
    %v945 = vld [vmem:[%s3 + $0x10] sm:$0xf]
    %v946 = vld [vmem:[%s3 + $0x14] sm:$0xf]
    %v947 = vld [vmem:[%s3 + $0x18] sm:$0xf]
    %v948 = vld [vmem:[%s3 + $0x1c] sm:$0xf]
    %s949 = scalar_lea.vmem [#allocation2], 17
    %v950 = vld [vmem:[%s949] ss:$2 sm:$0x7f]
    %v951 = vpack.c.bf16 %v950, %v950
    %v952 = vld [vmem:[%s624] sm:$0xf]
    %v953 = vld [vmem:[%s624 + $0x4] sm:$0xf]
    %v954 = vld [vmem:[%s624 + $0x8] sm:$0xf]
    %v955 = vld [vmem:[%s624 + $0xc] sm:$0xf]
    %v956 = vld [vmem:[%s624 + $0x10] sm:$0xf]
    %v957 = vld [vmem:[%s624 + $0x14] sm:$0xf]
    %v958 = vld [vmem:[%s624 + $0x18] sm:$0xf]
    %v959 = vld [vmem:[%s624 + $0x1c] sm:$0xf]
    %v968 = vunpack.c.l.b16 %v952
    %v969 = vunpack.c.l.b16 %v953
    %v970 = vunpack.c.l.b16 %v954
    %v971 = vunpack.c.l.b16 %v955
    %v972 = vunpack.c.l.b16 %v956
    %v973 = vunpack.c.l.b16 %v957
    %v974 = vunpack.c.l.b16 %v958
    %v975 = vunpack.c.l.b16 %v959
    %v976 = vpack.c.b16 %v969, %v968
    %v977 = vpack.c.b16 %v971, %v970
    %v978 = vpack.c.b16 %v973, %v972
    %v979 = vpack.c.b16 %v975, %v974
    %v985 = vsel %vm31, %v951, 0
    %987 = vmatprep.subr.bf16.mxu0 0
    %988 = vmatpush1.bf16.msra.mxu0 %v976
    %989 = vmatprep.subr.bf16.mxu0 0
    %990 = vmatpush1.bf16.msra.mxu0 %v977
    %991 = vmatprep.subr.bf16.mxu0 0
    %992 = vmatpush1.bf16.msra.mxu0 %v978
    %993 = vmatprep.subr.bf16.mxu0 0
    %994 = vmatpush1.bf16.msra.mxu0 %v979
    %995 = vmatprep.subr.bf16.mxu0 0
    %996 = vmatpush1.bf16.msra.mxu0 0
    %997 = vmatprep.subr.bf16.mxu0 0
    %998 = vmatpush1.bf16.msra.mxu0 0
    %999 = vmatprep.subr.bf16.mxu0 0
    %1000 = vmatpush1.bf16.msra.mxu0 0
    %1001 = vmatprep.subr.bf16.mxu0 0
    %1002 = vmatpush1.bf16.msra.mxu0 0
    %1003 = vmatprep.subr.bf16.mxu0 0
    %1004 = vmatpush1.bf16.msra.mxu0 0
    %1005 = vmatprep.subr.bf16.mxu0 0
    %1006 = vmatpush1.bf16.msra.mxu0 0
    %1007 = vmatprep.subr.bf16.mxu0 0
    %1008 = vmatpush1.bf16.msra.mxu0 0
    %1009 = vmatprep.subr.bf16.mxu0 0
    %1010 = vmatpush1.bf16.msra.mxu0 0
    %1011 = vmatprep.subr.bf16.mxu0 0
    %1012 = vmatpush1.bf16.msra.mxu0 0
    %1013 = vmatprep.subr.bf16.mxu0 0
    %1014 = vmatpush1.bf16.msra.mxu0 0
    %1015 = vmatprep.subr.bf16.mxu0 0
    %1016 = vmatpush1.bf16.msra.mxu0 0
    %1017 = vmatprep.subr.bf16.mxu0 0
    %1018 = vmatpush1.bf16.msra.mxu0 0
    %1019 = vmatprep.mubr.bf16.mxu0 0
    %1020 = vmatmul.mubr.bf16.gmra.mrb[0].mxu0 %v985
    %v1021 = vpop.f32.mrb[0].mxu0
    %v1022 = vadd.f32 0.0, %v1021
    %v1023 = vpop.f32.mrb[0].mxu0
    %v1024 = vpop.f32.mrb[0].mxu0
    %v1025 = vpop.f32.mrb[0].mxu0
    %1026 = vdwg.mxu0
    %v1035 = vunpack.c.l.b16 %v941
    %v1036 = vunpack.c.l.b16 %v942
    %v1037 = vunpack.c.l.b16 %v943
    %v1038 = vunpack.c.l.b16 %v944
    %v1039 = vunpack.c.l.b16 %v945
    %v1040 = vunpack.c.l.b16 %v946
    %v1041 = vunpack.c.l.b16 %v947
    %v1042 = vunpack.c.l.b16 %v948
    %v1043 = vpack.c.b16 %v1036, %v1035
    %v1044 = vpack.c.b16 %v1038, %v1037
    %v1045 = vpack.c.b16 %v1040, %v1039
    %v1046 = vpack.c.b16 %v1042, %v1041
    %v1052 = vsel %vm31, %v940, 0
    %1054 = vmatprep.subr.bf16.mxu0 0
    %1055 = vmatpush1.bf16.msra.mxu0 %v1043
    %1056 = vmatprep.subr.bf16.mxu0 0
    %1057 = vmatpush1.bf16.msra.mxu0 %v1044
    %1058 = vmatprep.subr.bf16.mxu0 0
    %1059 = vmatpush1.bf16.msra.mxu0 %v1045
    %1060 = vmatprep.subr.bf16.mxu0 0
    %1061 = vmatpush1.bf16.msra.mxu0 %v1046
    %1062 = vmatprep.subr.bf16.mxu0 0
    %1063 = vmatpush1.bf16.msra.mxu0 0
    %1064 = vmatprep.subr.bf16.mxu0 0
    %1065 = vmatpush1.bf16.msra.mxu0 0
    %1066 = vmatprep.subr.bf16.mxu0 0
    %1067 = vmatpush1.bf16.msra.mxu0 0
    %1068 = vmatprep.subr.bf16.mxu0 0
    %1069 = vmatpush1.bf16.msra.mxu0 0
    %1070 = vmatprep.subr.bf16.mxu0 0
    %1071 = vmatpush1.bf16.msra.mxu0 0
    %1072 = vmatprep.subr.bf16.mxu0 0
    %1073 = vmatpush1.bf16.msra.mxu0 0
    %1074 = vmatprep.subr.bf16.mxu0 0
    %1075 = vmatpush1.bf16.msra.mxu0 0
    %1076 = vmatprep.subr.bf16.mxu0 0
    %1077 = vmatpush1.bf16.msra.mxu0 0
    %1078 = vmatprep.subr.bf16.mxu0 0
    %1079 = vmatpush1.bf16.msra.mxu0 0
    %1080 = vmatprep.subr.bf16.mxu0 0
    %1081 = vmatpush1.bf16.msra.mxu0 0
    %1082 = vmatprep.subr.bf16.mxu0 0
    %1083 = vmatpush1.bf16.msra.mxu0 0
    %1084 = vmatprep.subr.bf16.mxu0 0
    %1085 = vmatpush1.bf16.msra.mxu0 0
    %1086 = vmatprep.mubr.bf16.mxu0 0
    %1087 = vmatmul.mubr.bf16.gmra.mrb[0].mxu0 %v1052
    %v1088 = vpop.f32.mrb[0].mxu0
    %v1089 = vadd.f32 %v1022, %v1088
    %v1090 = vpop.f32.mrb[0].mxu0
    %v1091 = vpop.f32.mrb[0].mxu0
    %v1092 = vpop.f32.mrb[0].mxu0
    %1093 = vdwg.mxu0
    %s1094 = scalar_lea.vmem [#allocation2], 18
    %v1095 = vld [vmem:[%s1094] ss:$2 sm:$0x7f]
    %v1096 = vpack.c.bf16 %v1095, %v1095
    %v1097 = vld [vmem:[%s770] sm:$0xf]
    %v1098 = vld [vmem:[%s770 + $0x4] sm:$0xf]
    %v1099 = vld [vmem:[%s770 + $0x8] sm:$0xf]
    %v1100 = vld [vmem:[%s770 + $0xc] sm:$0xf]
    %v1101 = vld [vmem:[%s770 + $0x10] sm:$0xf]
    %v1102 = vld [vmem:[%s770 + $0x14] sm:$0xf]
    %v1103 = vld [vmem:[%s770 + $0x18] sm:$0xf]
    %v1104 = vld [vmem:[%s770 + $0x1c] sm:$0xf]
    %v1113 = vunpack.c.l.b16 %v1097
    %v1114 = vunpack.c.l.b16 %v1098
    %v1115 = vunpack.c.l.b16 %v1099
    %v1116 = vunpack.c.l.b16 %v1100
    %v1117 = vunpack.c.l.b16 %v1101
    %v1118 = vunpack.c.l.b16 %v1102
    %v1119 = vunpack.c.l.b16 %v1103
    %v1120 = vunpack.c.l.b16 %v1104
    %v1121 = vpack.c.b16 %v1114, %v1113
    %v1122 = vpack.c.b16 %v1116, %v1115
    %v1123 = vpack.c.b16 %v1118, %v1117
    %v1124 = vpack.c.b16 %v1120, %v1119
    %v1130 = vsel %vm31, %v1096, 0
    %1132 = vmatprep.subr.bf16.mxu0 0
    %1133 = vmatpush1.bf16.msra.mxu0 %v1121
    %1134 = vmatprep.subr.bf16.mxu0 0
    %1135 = vmatpush1.bf16.msra.mxu0 %v1122
    %1136 = vmatprep.subr.bf16.mxu0 0
    %1137 = vmatpush1.bf16.msra.mxu0 %v1123
    %1138 = vmatprep.subr.bf16.mxu0 0
    %1139 = vmatpush1.bf16.msra.mxu0 %v1124
    %1140 = vmatprep.subr.bf16.mxu0 0
    %1141 = vmatpush1.bf16.msra.mxu0 0
    %1142 = vmatprep.subr.bf16.mxu0 0
    %1143 = vmatpush1.bf16.msra.mxu0 0
    %1144 = vmatprep.subr.bf16.mxu0 0
    %1145 = vmatpush1.bf16.msra.mxu0 0
    %1146 = vmatprep.subr.bf16.mxu0 0
    %1147 = vmatpush1.bf16.msra.mxu0 0
    %1148 = vmatprep.subr.bf16.mxu0 0
    %1149 = vmatpush1.bf16.msra.mxu0 0
    %1150 = vmatprep.subr.bf16.mxu0 0
    %1151 = vmatpush1.bf16.msra.mxu0 0
    %1152 = vmatprep.subr.bf16.mxu0 0
    %1153 = vmatpush1.bf16.msra.mxu0 0
    %1154 = vmatprep.subr.bf16.mxu0 0
    %1155 = vmatpush1.bf16.msra.mxu0 0
    %1156 = vmatprep.subr.bf16.mxu0 0
    %1157 = vmatpush1.bf16.msra.mxu0 0
    %1158 = vmatprep.subr.bf16.mxu0 0
    %1159 = vmatpush1.bf16.msra.mxu0 0
    %1160 = vmatprep.subr.bf16.mxu0 0
    %1161 = vmatpush1.bf16.msra.mxu0 0
    %1162 = vmatprep.subr.bf16.mxu0 0
    %1163 = vmatpush1.bf16.msra.mxu0 0
    %1164 = vmatprep.mubr.bf16.mxu0 0
    %1165 = vmatmul.mubr.bf16.gmra.mrb[0].mxu0 %v1130
    %v1166 = vpop.f32.mrb[0].mxu0
    %v1167 = vadd.f32 0.0, %v1166
    %v1168 = vpop.f32.mrb[0].mxu0
    %v1169 = vpop.f32.mrb[0].mxu0
    %v1170 = vpop.f32.mrb[0].mxu0
    %1171 = vdwg.mxu0
    %v1172 = vadd.f32 %v1089, %v1167
    %s1173 = scalar_lea.vmem [#allocation2], 19
    %v1174 = vld [vmem:[%s1173] ss:$2 sm:$0x7f]
    %v1175 = vpack.c.bf16 %v1174, %v1174
    %v1176 = vld [vmem:[%s850] sm:$0xf]
    %v1177 = vld [vmem:[%s850 + $0x4] sm:$0xf]
    %v1178 = vld [vmem:[%s850 + $0x8] sm:$0xf]
    %v1179 = vld [vmem:[%s850 + $0xc] sm:$0xf]
    %v1180 = vld [vmem:[%s850 + $0x10] sm:$0xf]
    %v1181 = vld [vmem:[%s850 + $0x14] sm:$0xf]
    %v1182 = vld [vmem:[%s850 + $0x18] sm:$0xf]
    %v1183 = vld [vmem:[%s850 + $0x1c] sm:$0xf]
    %v1192 = vunpack.c.l.b16 %v1176
    %v1193 = vunpack.c.l.b16 %v1177
    %v1194 = vunpack.c.l.b16 %v1178
    %v1195 = vunpack.c.l.b16 %v1179
    %v1196 = vunpack.c.l.b16 %v1180
    %v1197 = vunpack.c.l.b16 %v1181
    %v1198 = vunpack.c.l.b16 %v1182
    %v1199 = vunpack.c.l.b16 %v1183
    %v1200 = vpack.c.b16 %v1193, %v1192
    %v1201 = vpack.c.b16 %v1195, %v1194
    %v1202 = vpack.c.b16 %v1197, %v1196
    %v1203 = vpack.c.b16 %v1199, %v1198
    %v1209 = vsel %vm31, %v1175, 0
    %1211 = vmatprep.subr.bf16.mxu0 0
    %1212 = vmatpush1.bf16.msra.mxu0 %v1200
    %1213 = vmatprep.subr.bf16.mxu0 0
    %1214 = vmatpush1.bf16.msra.mxu0 %v1201
    %1215 = vmatprep.subr.bf16.mxu0 0
    %1216 = vmatpush1.bf16.msra.mxu0 %v1202
    %1217 = vmatprep.subr.bf16.mxu0 0
    %1218 = vmatpush1.bf16.msra.mxu0 %v1203
    %1219 = vmatprep.subr.bf16.mxu0 0
    %1220 = vmatpush1.bf16.msra.mxu0 0
    %1221 = vmatprep.subr.bf16.mxu0 0
    %1222 = vmatpush1.bf16.msra.mxu0 0
    %1223 = vmatprep.subr.bf16.mxu0 0
    %1224 = vmatpush1.bf16.msra.mxu0 0
    %1225 = vmatprep.subr.bf16.mxu0 0
    %1226 = vmatpush1.bf16.msra.mxu0 0
    %1227 = vmatprep.subr.bf16.mxu0 0
    %1228 = vmatpush1.bf16.msra.mxu0 0
    %1229 = vmatprep.subr.bf16.mxu0 0
    %1230 = vmatpush1.bf16.msra.mxu0 0
    %1231 = vmatprep.subr.bf16.mxu0 0
    %1232 = vmatpush1.bf16.msra.mxu0 0
    %1233 = vmatprep.subr.bf16.mxu0 0
    %1234 = vmatpush1.bf16.msra.mxu0 0
    %1235 = vmatprep.subr.bf16.mxu0 0
    %1236 = vmatpush1.bf16.msra.mxu0 0
    %1237 = vmatprep.subr.bf16.mxu0 0
    %1238 = vmatpush1.bf16.msra.mxu0 0
    %1239 = vmatprep.subr.bf16.mxu0 0
    %1240 = vmatpush1.bf16.msra.mxu0 0
    %1241 = vmatprep.subr.bf16.mxu0 0
    %1242 = vmatpush1.bf16.msra.mxu0 0
    %1243 = vmatprep.mubr.bf16.mxu0 0
    %1244 = vmatmul.mubr.bf16.gmra.mrb[0].mxu0 %v1209
    %v1245 = vpop.f32.mrb[0].mxu0
    %v1246 = vadd.f32 0.0, %v1245
    %v1247 = vpop.f32.mrb[0].mxu0
    %v1248 = vpop.f32.mrb[0].mxu0
    %v1249 = vpop.f32.mrb[0].mxu0
    %1250 = vdwg.mxu0
    %v1251 = vadd.f32 %v1172, %v1246
    %v1252 = vld [vmem:[%s4] sm:$0x1]
    %v1254 = vlaneseq
    %v1255 = vshrl.u32 %v1254, 7
    %v1256 = vsub.s32 0, %v1255
    %v1257 = vrot.slane %v1252, %v1256
    %v1259 = vadd.f32 %v1251, %v1257
    %v1260 = vmax.f32 %v1259, 0.0
    %1261 = vst.msk [vmem:[#allocation3 + $0x7] sm:$0x7f] %vm936, %v1260
    %v1262 = vld [vmem:[%s6] sm:$0x1]
    %v1264 = vlaneseq
    %v1265 = vshrl.u32 %v1264, 7
    %v1266 = vsub.s32 0, %v1265
    %v1267 = vrot.slane %v1262, %v1266
    %v1269 = vadd.f32 %v1267, 0.0
    %v1270 = vld [vmem:[#allocation3] ss:$7 sm:$0x3]
    %v1271 = vld [vmem:[%s5] sm:$0xf]
    %v1272 = vld [vmem:[%s5 + $0x4] sm:$0xf]
    %v1273 = vld [vmem:[%s5 + $0x8] sm:$0xf]
    %v1274 = vld [vmem:[%s5 + $0xc] sm:$0xf]
    %v1275 = vld [vmem:[%s5 + $0x10] sm:$0xf]
    %v1276 = vld [vmem:[%s5 + $0x14] sm:$0xf]
    %v1277 = vld [vmem:[%s5 + $0x18] sm:$0xf]
    %v1278 = vpack.c.bf16 %v1270, %v1270
    %v1286 = vunpack.c.l.b16 %v1271
    %v1287 = vunpack.c.l.b16 %v1272
    %v1288 = vunpack.c.l.b16 %v1273
    %v1289 = vunpack.c.l.b16 %v1274
    %v1290 = vunpack.c.l.b16 %v1275
    %v1291 = vunpack.c.l.b16 %v1276
    %v1292 = vunpack.c.l.b16 %v1277
    %v1293 = vpack.c.b16 %v1287, %v1286
    %v1294 = vpack.c.b16 %v1289, %v1288
    %v1295 = vpack.c.b16 %v1291, %v1290
    %v1296 = vpack.c.b16 %v1292, %v1292
    %vm1300 = vcmask 457728
    %v1302 = vsel %vm1300, %v1278, 0
    %vm1304 = vcmask 1043456
    %v1306 = vsel %vm1304, %v1296, 0
    %1308 = vmatprep.subr.bf16.mxu0 0
    %1309 = vmatpush1.bf16.msra.mxu0 %v1293
    %1310 = vmatprep.subr.bf16.mxu0 0
    %1311 = vmatpush1.bf16.msra.mxu0 %v1294
    %1312 = vmatprep.subr.bf16.mxu0 0
    %1313 = vmatpush1.bf16.msra.mxu0 %v1295
    %1314 = vmatprep.subr.bf16.mxu0 0
    %1315 = vmatpush1.bf16.msra.mxu0 %v1306
    %1316 = vmatprep.subr.bf16.mxu0 0
    %1317 = vmatpush1.bf16.msra.mxu0 0
    %1318 = vmatprep.subr.bf16.mxu0 0
    %1319 = vmatpush1.bf16.msra.mxu0 0
    %1320 = vmatprep.subr.bf16.mxu0 0
    %1321 = vmatpush1.bf16.msra.mxu0 0
    %1322 = vmatprep.subr.bf16.mxu0 0
    %1323 = vmatpush1.bf16.msra.mxu0 0
    %1324 = vmatprep.subr.bf16.mxu0 0
    %1325 = vmatpush1.bf16.msra.mxu0 0
    %1326 = vmatprep.subr.bf16.mxu0 0
    %1327 = vmatpush1.bf16.msra.mxu0 0
    %1328 = vmatprep.subr.bf16.mxu0 0
    %1329 = vmatpush1.bf16.msra.mxu0 0
    %1330 = vmatprep.subr.bf16.mxu0 0
    %1331 = vmatpush1.bf16.msra.mxu0 0
    %1332 = vmatprep.subr.bf16.mxu0 0
    %1333 = vmatpush1.bf16.msra.mxu0 0
    %1334 = vmatprep.subr.bf16.mxu0 0
    %1335 = vmatpush1.bf16.msra.mxu0 0
    %1336 = vmatprep.subr.bf16.mxu0 0
    %1337 = vmatpush1.bf16.msra.mxu0 0
    %1338 = vmatprep.subr.bf16.mxu0 0
    %1339 = vmatpush1.bf16.msra.mxu0 0
    %1340 = vmatprep.mubr.bf16.mxu0 0
    %1341 = vmatmul.mubr.bf16.gmra.mrb[0].mxu0 %v1302
    %v1342 = vpop.f32.mrb[0].mxu0
    %v1343 = vadd.f32 0.0, %v1342
    %v1344 = vpop.f32.mrb[0].mxu0
    %v1345 = vpop.f32.mrb[0].mxu0
    %v1346 = vpop.f32.mrb[0].mxu0
    %1347 = vdwg.mxu0
    %v1348 = vadd.f32 %v1269, %v1343
    %s1349 = scalar_lea.vmem [#allocation3], 1
    %v1350 = vld [vmem:[%s1349] ss:$7 sm:$0x3]
    %v1351 = vld [vmem:[%s5 + $0x1c] sm:$0xf]
    %v1352 = vld [vmem:[%s5 + $0x20] sm:$0xf]
    %v1353 = vld [vmem:[%s5 + $0x24] sm:$0xf]
    %v1354 = vld [vmem:[%s5 + $0x28] sm:$0xf]
    %v1355 = vld [vmem:[%s5 + $0x2c] sm:$0xf]
    %v1356 = vld [vmem:[%s5 + $0x30] sm:$0xf]
    %v1357 = vld [vmem:[%s5 + $0x34] sm:$0xf]
    %v1358 = vpack.c.bf16 %v1350, %v1350
    %v1366 = vunpack.c.l.b16 %v1351
    %v1367 = vunpack.c.l.b16 %v1352
    %v1368 = vunpack.c.l.b16 %v1353
    %v1369 = vunpack.c.l.b16 %v1354
    %v1370 = vunpack.c.l.b16 %v1355
    %v1371 = vunpack.c.l.b16 %v1356
    %v1372 = vunpack.c.l.b16 %v1357
    %v1373 = vpack.c.b16 %v1367, %v1366
    %v1374 = vpack.c.b16 %v1369, %v1368
    %v1375 = vpack.c.b16 %v1371, %v1370
    %v1376 = vpack.c.b16 %v1372, %v1372
    %v1381 = vsel %vm1300, %v1358, 0
    %v1384 = vsel %vm1304, %v1376, 0
    %1386 = vmatprep.subr.bf16.mxu0 0
    %1387 = vmatpush1.bf16.msra.mxu0 %v1373
    %1388 = vmatprep.subr.bf16.mxu0 0
    %1389 = vmatpush1.bf16.msra.mxu0 %v1374
    %1390 = vmatprep.subr.bf16.mxu0 0
    %1391 = vmatpush1.bf16.msra.mxu0 %v1375
    %1392 = vmatprep.subr.bf16.mxu0 0
    %1393 = vmatpush1.bf16.msra.mxu0 %v1384
    %1394 = vmatprep.subr.bf16.mxu0 0
    %1395 = vmatpush1.bf16.msra.mxu0 0
    %1396 = vmatprep.subr.bf16.mxu0 0
    %1397 = vmatpush1.bf16.msra.mxu0 0
    %1398 = vmatprep.subr.bf16.mxu0 0
    %1399 = vmatpush1.bf16.msra.mxu0 0
    %1400 = vmatprep.subr.bf16.mxu0 0
    %1401 = vmatpush1.bf16.msra.mxu0 0
    %1402 = vmatprep.subr.bf16.mxu0 0
    %1403 = vmatpush1.bf16.msra.mxu0 0
    %1404 = vmatprep.subr.bf16.mxu0 0
    %1405 = vmatpush1.bf16.msra.mxu0 0
    %1406 = vmatprep.subr.bf16.mxu0 0
    %1407 = vmatpush1.bf16.msra.mxu0 0
    %1408 = vmatprep.subr.bf16.mxu0 0
    %1409 = vmatpush1.bf16.msra.mxu0 0
    %1410 = vmatprep.subr.bf16.mxu0 0
    %1411 = vmatpush1.bf16.msra.mxu0 0
    %1412 = vmatprep.subr.bf16.mxu0 0
    %1413 = vmatpush1.bf16.msra.mxu0 0
    %1414 = vmatprep.subr.bf16.mxu0 0
    %1415 = vmatpush1.bf16.msra.mxu0 0
    %1416 = vmatprep.subr.bf16.mxu0 0
    %1417 = vmatpush1.bf16.msra.mxu0 0
    %1418 = vmatprep.mubr.bf16.mxu0 0
    %1419 = vmatmul.mubr.bf16.gmra.mrb[0].mxu0 %v1381
    %v1420 = vpop.f32.mrb[0].mxu0
    %v1421 = vadd.f32 0.0, %v1420
    %v1422 = vpop.f32.mrb[0].mxu0
    %v1423 = vpop.f32.mrb[0].mxu0
    %v1424 = vpop.f32.mrb[0].mxu0
    %1425 = vdwg.mxu0
    %v1426 = vadd.f32 %v1348, %v1421
    %s1427 = scalar_lea.vmem [#allocation3], 2
    %v1428 = vld [vmem:[%s1427] ss:$7 sm:$0x3]
    %v1429 = vld [vmem:[%s5 + $0x38] sm:$0xf]
    %v1430 = vld [vmem:[%s5 + $0x3c] sm:$0xf]
    %v1431 = vld [vmem:[%s5 + $0x40] sm:$0xf]
    %v1432 = vld [vmem:[%s5 + $0x44] sm:$0xf]
    %v1433 = vld [vmem:[%s5 + $0x48] sm:$0xf]
    %v1434 = vld [vmem:[%s5 + $0x4c] sm:$0xf]
    %v1435 = vld [vmem:[%s5 + $0x50] sm:$0xf]
    %v1436 = vpack.c.bf16 %v1428, %v1428
    %v1444 = vunpack.c.l.b16 %v1429
    %v1445 = vunpack.c.l.b16 %v1430
    %v1446 = vunpack.c.l.b16 %v1431
    %v1447 = vunpack.c.l.b16 %v1432
    %v1448 = vunpack.c.l.b16 %v1433
    %v1449 = vunpack.c.l.b16 %v1434
    %v1450 = vunpack.c.l.b16 %v1435
    %v1451 = vpack.c.b16 %v1445, %v1444
    %v1452 = vpack.c.b16 %v1447, %v1446
    %v1453 = vpack.c.b16 %v1449, %v1448
    %v1454 = vpack.c.b16 %v1450, %v1450
    %v1459 = vsel %vm1300, %v1436, 0
    %v1462 = vsel %vm1304, %v1454, 0
    %1464 = vmatprep.subr.bf16.mxu0 0
    %1465 = vmatpush1.bf16.msra.mxu0 %v1451
    %1466 = vmatprep.subr.bf16.mxu0 0
    %1467 = vmatpush1.bf16.msra.mxu0 %v1452
    %1468 = vmatprep.subr.bf16.mxu0 0
    %1469 = vmatpush1.bf16.msra.mxu0 %v1453
    %1470 = vmatprep.subr.bf16.mxu0 0
    %1471 = vmatpush1.bf16.msra.mxu0 %v1462
    %1472 = vmatprep.subr.bf16.mxu0 0
    %1473 = vmatpush1.bf16.msra.mxu0 0
    %1474 = vmatprep.subr.bf16.mxu0 0
    %1475 = vmatpush1.bf16.msra.mxu0 0
    %1476 = vmatprep.subr.bf16.mxu0 0
    %1477 = vmatpush1.bf16.msra.mxu0 0
    %1478 = vmatprep.subr.bf16.mxu0 0
    %1479 = vmatpush1.bf16.msra.mxu0 0
    %1480 = vmatprep.subr.bf16.mxu0 0
    %1481 = vmatpush1.bf16.msra.mxu0 0
    %1482 = vmatprep.subr.bf16.mxu0 0
    %1483 = vmatpush1.bf16.msra.mxu0 0
    %1484 = vmatprep.subr.bf16.mxu0 0
    %1485 = vmatpush1.bf16.msra.mxu0 0
    %1486 = vmatprep.subr.bf16.mxu0 0
    %1487 = vmatpush1.bf16.msra.mxu0 0
    %1488 = vmatprep.subr.bf16.mxu0 0
    %1489 = vmatpush1.bf16.msra.mxu0 0
    %1490 = vmatprep.subr.bf16.mxu0 0
    %1491 = vmatpush1.bf16.msra.mxu0 0
    %1492 = vmatprep.subr.bf16.mxu0 0
    %1493 = vmatpush1.bf16.msra.mxu0 0
    %1494 = vmatprep.subr.bf16.mxu0 0
    %1495 = vmatpush1.bf16.msra.mxu0 0
    %1496 = vmatprep.mubr.bf16.mxu0 0
    %1497 = vmatmul.mubr.bf16.gmra.mrb[0].mxu0 %v1459
    %v1498 = vpop.f32.mrb[0].mxu0
    %v1499 = vadd.f32 0.0, %v1498
    %v1500 = vpop.f32.mrb[0].mxu0
    %v1501 = vpop.f32.mrb[0].mxu0
    %v1502 = vpop.f32.mrb[0].mxu0
    %1503 = vdwg.mxu0
    %v1504 = vadd.f32 %v1426, %v1499
    %s1505 = scalar_lea.vmem [#allocation3], 3
    %v1506 = vld [vmem:[%s1505] ss:$7 sm:$0x3]
    %v1507 = vld [vmem:[%s5 + $0x54] sm:$0xf]
    %v1508 = vld [vmem:[%s5 + $0x58] sm:$0xf]
    %v1509 = vld [vmem:[%s5 + $0x5c] sm:$0xf]
    %v1510 = vld [vmem:[%s5 + $0x60] sm:$0xf]
    %v1511 = vld [vmem:[%s5 + $0x64] sm:$0xf]
    %v1512 = vld [vmem:[%s5 + $0x68] sm:$0xf]
    %v1513 = vld [vmem:[%s5 + $0x6c] sm:$0xf]
    %v1514 = vpack.c.bf16 %v1506, %v1506
    %v1522 = vunpack.c.l.b16 %v1507
    %v1523 = vunpack.c.l.b16 %v1508
    %v1524 = vunpack.c.l.b16 %v1509
    %v1525 = vunpack.c.l.b16 %v1510
    %v1526 = vunpack.c.l.b16 %v1511
    %v1527 = vunpack.c.l.b16 %v1512
    %v1528 = vunpack.c.l.b16 %v1513
    %v1529 = vpack.c.b16 %v1523, %v1522
    %v1530 = vpack.c.b16 %v1525, %v1524
    %v1531 = vpack.c.b16 %v1527, %v1526
    %v1532 = vpack.c.b16 %v1528, %v1528
    %v1537 = vsel %vm1300, %v1514, 0
    %v1540 = vsel %vm1304, %v1532, 0
    %1542 = vmatprep.subr.bf16.mxu0 0
    %1543 = vmatpush1.bf16.msra.mxu0 %v1529
    %1544 = vmatprep.subr.bf16.mxu0 0
    %1545 = vmatpush1.bf16.msra.mxu0 %v1530
    %1546 = vmatprep.subr.bf16.mxu0 0
    %1547 = vmatpush1.bf16.msra.mxu0 %v1531
    %1548 = vmatprep.subr.bf16.mxu0 0
    %1549 = vmatpush1.bf16.msra.mxu0 %v1540
    %1550 = vmatprep.subr.bf16.mxu0 0
    %1551 = vmatpush1.bf16.msra.mxu0 0
    %1552 = vmatprep.subr.bf16.mxu0 0
    %1553 = vmatpush1.bf16.msra.mxu0 0
    %1554 = vmatprep.subr.bf16.mxu0 0
    %1555 = vmatpush1.bf16.msra.mxu0 0
    %1556 = vmatprep.subr.bf16.mxu0 0
    %1557 = vmatpush1.bf16.msra.mxu0 0
    %1558 = vmatprep.subr.bf16.mxu0 0
    %1559 = vmatpush1.bf16.msra.mxu0 0
    %1560 = vmatprep.subr.bf16.mxu0 0
    %1561 = vmatpush1.bf16.msra.mxu0 0
    %1562 = vmatprep.subr.bf16.mxu0 0
    %1563 = vmatpush1.bf16.msra.mxu0 0
    %1564 = vmatprep.subr.bf16.mxu0 0
    %1565 = vmatpush1.bf16.msra.mxu0 0
    %1566 = vmatprep.subr.bf16.mxu0 0
    %1567 = vmatpush1.bf16.msra.mxu0 0
    %1568 = vmatprep.subr.bf16.mxu0 0
    %1569 = vmatpush1.bf16.msra.mxu0 0
    %1570 = vmatprep.subr.bf16.mxu0 0
    %1571 = vmatpush1.bf16.msra.mxu0 0
    %1572 = vmatprep.subr.bf16.mxu0 0
    %1573 = vmatpush1.bf16.msra.mxu0 0
    %1574 = vmatprep.mubr.bf16.mxu0 0
    %1575 = vmatmul.mubr.bf16.gmra.mrb[0].mxu0 %v1537
    %v1576 = vpop.f32.mrb[0].mxu0
    %v1577 = vadd.f32 0.0, %v1576
    %v1578 = vpop.f32.mrb[0].mxu0
    %v1579 = vpop.f32.mrb[0].mxu0
    %v1580 = vpop.f32.mrb[0].mxu0
    %1581 = vdwg.mxu0
    %v1582 = vadd.f32 %v1504, %v1577
    %s1583 = scalar_lea.vmem [#allocation3], 4
    %v1584 = vld [vmem:[%s1583] ss:$7 sm:$0x3]
    %v1585 = vld [vmem:[%s5 + $0x70] sm:$0xf]
    %v1586 = vld [vmem:[%s5 + $0x74] sm:$0xf]
    %v1587 = vld [vmem:[%s5 + $0x78] sm:$0xf]
    %v1588 = vld [vmem:[%s5 + $0x7c] sm:$0xf]
    %v1589 = vld [vmem:[%s5 + $0x80] sm:$0xf]
    %v1590 = vld [vmem:[%s5 + $0x84] sm:$0xf]
    %v1591 = vld [vmem:[%s5 + $0x88] sm:$0xf]
    %v1592 = vpack.c.bf16 %v1584, %v1584
    %v1600 = vunpack.c.l.b16 %v1585
    %v1601 = vunpack.c.l.b16 %v1586
    %v1602 = vunpack.c.l.b16 %v1587
    %v1603 = vunpack.c.l.b16 %v1588
    %v1604 = vunpack.c.l.b16 %v1589
    %v1605 = vunpack.c.l.b16 %v1590
    %v1606 = vunpack.c.l.b16 %v1591
    %v1607 = vpack.c.b16 %v1601, %v1600
    %v1608 = vpack.c.b16 %v1603, %v1602
    %v1609 = vpack.c.b16 %v1605, %v1604
    %v1610 = vpack.c.b16 %v1606, %v1606
    %v1615 = vsel %vm1300, %v1592, 0
    %v1618 = vsel %vm1304, %v1610, 0
    %1620 = vmatprep.subr.bf16.mxu0 0
    %1621 = vmatpush1.bf16.msra.mxu0 %v1607
    %1622 = vmatprep.subr.bf16.mxu0 0
    %1623 = vmatpush1.bf16.msra.mxu0 %v1608
    %1624 = vmatprep.subr.bf16.mxu0 0
    %1625 = vmatpush1.bf16.msra.mxu0 %v1609
    %1626 = vmatprep.subr.bf16.mxu0 0
    %1627 = vmatpush1.bf16.msra.mxu0 %v1618
    %1628 = vmatprep.subr.bf16.mxu0 0
    %1629 = vmatpush1.bf16.msra.mxu0 0
    %1630 = vmatprep.subr.bf16.mxu0 0
    %1631 = vmatpush1.bf16.msra.mxu0 0
    %1632 = vmatprep.subr.bf16.mxu0 0
    %1633 = vmatpush1.bf16.msra.mxu0 0
    %1634 = vmatprep.subr.bf16.mxu0 0
    %1635 = vmatpush1.bf16.msra.mxu0 0
    %1636 = vmatprep.subr.bf16.mxu0 0
    %1637 = vmatpush1.bf16.msra.mxu0 0
    %1638 = vmatprep.subr.bf16.mxu0 0
    %1639 = vmatpush1.bf16.msra.mxu0 0
    %1640 = vmatprep.subr.bf16.mxu0 0
    %1641 = vmatpush1.bf16.msra.mxu0 0
    %1642 = vmatprep.subr.bf16.mxu0 0
    %1643 = vmatpush1.bf16.msra.mxu0 0
    %1644 = vmatprep.subr.bf16.mxu0 0
    %1645 = vmatpush1.bf16.msra.mxu0 0
    %1646 = vmatprep.subr.bf16.mxu0 0
    %1647 = vmatpush1.bf16.msra.mxu0 0
    %1648 = vmatprep.subr.bf16.mxu0 0
    %1649 = vmatpush1.bf16.msra.mxu0 0
    %1650 = vmatprep.subr.bf16.mxu0 0
    %1651 = vmatpush1.bf16.msra.mxu0 0
    %1652 = vmatprep.mubr.bf16.mxu0 0
    %1653 = vmatmul.mubr.bf16.gmra.mrb[0].mxu0 %v1615
    %v1654 = vpop.f32.mrb[0].mxu0
    %v1655 = vadd.f32 0.0, %v1654
    %v1656 = vpop.f32.mrb[0].mxu0
    %v1657 = vpop.f32.mrb[0].mxu0
    %v1658 = vpop.f32.mrb[0].mxu0
    %1659 = vdwg.mxu0
    %v1660 = vadd.f32 %v1582, %v1655
    %s1661 = scalar_lea.vmem [#allocation3], 5
    %v1662 = vld [vmem:[%s1661] ss:$7 sm:$0x3]
    %v1663 = vld [vmem:[%s5 + $0x8c] sm:$0xf]
    %v1664 = vld [vmem:[%s5 + $0x90] sm:$0xf]
    %v1665 = vld [vmem:[%s5 + $0x94] sm:$0xf]
    %v1666 = vld [vmem:[%s5 + $0x98] sm:$0xf]
    %v1667 = vld [vmem:[%s5 + $0x9c] sm:$0xf]
    %v1668 = vld [vmem:[%s5 + $0xa0] sm:$0xf]
    %v1669 = vld [vmem:[%s5 + $0xa4] sm:$0xf]
    %v1670 = vpack.c.bf16 %v1662, %v1662
    %v1678 = vunpack.c.l.b16 %v1663
    %v1679 = vunpack.c.l.b16 %v1664
    %v1680 = vunpack.c.l.b16 %v1665
    %v1681 = vunpack.c.l.b16 %v1666
    %v1682 = vunpack.c.l.b16 %v1667
    %v1683 = vunpack.c.l.b16 %v1668
    %v1684 = vunpack.c.l.b16 %v1669
    %v1685 = vpack.c.b16 %v1679, %v1678
    %v1686 = vpack.c.b16 %v1681, %v1680
    %v1687 = vpack.c.b16 %v1683, %v1682
    %v1688 = vpack.c.b16 %v1684, %v1684
    %v1693 = vsel %vm1300, %v1670, 0
    %v1696 = vsel %vm1304, %v1688, 0
    %1698 = vmatprep.subr.bf16.mxu0 0
    %1699 = vmatpush1.bf16.msra.mxu0 %v1685
    %1700 = vmatprep.subr.bf16.mxu0 0
    %1701 = vmatpush1.bf16.msra.mxu0 %v1686
    %1702 = vmatprep.subr.bf16.mxu0 0
    %1703 = vmatpush1.bf16.msra.mxu0 %v1687
    %1704 = vmatprep.subr.bf16.mxu0 0
    %1705 = vmatpush1.bf16.msra.mxu0 %v1696
    %1706 = vmatprep.subr.bf16.mxu0 0
    %1707 = vmatpush1.bf16.msra.mxu0 0
    %1708 = vmatprep.subr.bf16.mxu0 0
    %1709 = vmatpush1.bf16.msra.mxu0 0
    %1710 = vmatprep.subr.bf16.mxu0 0
    %1711 = vmatpush1.bf16.msra.mxu0 0
    %1712 = vmatprep.subr.bf16.mxu0 0
    %1713 = vmatpush1.bf16.msra.mxu0 0
    %1714 = vmatprep.subr.bf16.mxu0 0
    %1715 = vmatpush1.bf16.msra.mxu0 0
    %1716 = vmatprep.subr.bf16.mxu0 0
    %1717 = vmatpush1.bf16.msra.mxu0 0
    %1718 = vmatprep.subr.bf16.mxu0 0
    %1719 = vmatpush1.bf16.msra.mxu0 0
    %1720 = vmatprep.subr.bf16.mxu0 0
    %1721 = vmatpush1.bf16.msra.mxu0 0
    %1722 = vmatprep.subr.bf16.mxu0 0
    %1723 = vmatpush1.bf16.msra.mxu0 0
    %1724 = vmatprep.subr.bf16.mxu0 0
    %1725 = vmatpush1.bf16.msra.mxu0 0
    %1726 = vmatprep.subr.bf16.mxu0 0
    %1727 = vmatpush1.bf16.msra.mxu0 0
    %1728 = vmatprep.subr.bf16.mxu0 0
    %1729 = vmatpush1.bf16.msra.mxu0 0
    %1730 = vmatprep.mubr.bf16.mxu0 0
    %1731 = vmatmul.mubr.bf16.gmra.mrb[0].mxu0 %v1693
    %v1732 = vpop.f32.mrb[0].mxu0
    %v1733 = vadd.f32 0.0, %v1732
    %v1734 = vpop.f32.mrb[0].mxu0
    %v1735 = vpop.f32.mrb[0].mxu0
    %v1736 = vpop.f32.mrb[0].mxu0
    %1737 = vdwg.mxu0
    %v1738 = vadd.f32 %v1660, %v1733
    %s1739 = scalar_lea.vmem [#allocation3], 6
    %v1740 = vld [vmem:[%s1739] ss:$7 sm:$0x3]
    %v1741 = vld [vmem:[%s5 + $0xa8] sm:$0xf]
    %v1742 = vld [vmem:[%s5 + $0xac] sm:$0xf]
    %v1743 = vld [vmem:[%s5 + $0xb0] sm:$0xf]
    %v1744 = vld [vmem:[%s5 + $0xb4] sm:$0xf]
    %v1745 = vld [vmem:[%s5 + $0xb8] sm:$0xf]
    %v1746 = vld [vmem:[%s5 + $0xbc] sm:$0xf]
    %v1747 = vld [vmem:[%s5 + $0xc0] sm:$0xf]
    %v1748 = vpack.c.bf16 %v1740, %v1740
    %v1756 = vunpack.c.l.b16 %v1741
    %v1757 = vunpack.c.l.b16 %v1742
    %v1758 = vunpack.c.l.b16 %v1743
    %v1759 = vunpack.c.l.b16 %v1744
    %v1760 = vunpack.c.l.b16 %v1745
    %v1761 = vunpack.c.l.b16 %v1746
    %v1762 = vunpack.c.l.b16 %v1747
    %v1763 = vpack.c.b16 %v1757, %v1756
    %v1764 = vpack.c.b16 %v1759, %v1758
    %v1765 = vpack.c.b16 %v1761, %v1760
    %v1766 = vpack.c.b16 %v1762, %v1762
    %v1771 = vsel %vm1300, %v1748, 0
    %v1774 = vsel %vm1304, %v1766, 0
    %1776 = vmatprep.subr.bf16.mxu0 0
    %1777 = vmatpush1.bf16.msra.mxu0 %v1763
    %1778 = vmatprep.subr.bf16.mxu0 0
    %1779 = vmatpush1.bf16.msra.mxu0 %v1764
    %1780 = vmatprep.subr.bf16.mxu0 0
    %1781 = vmatpush1.bf16.msra.mxu0 %v1765
    %1782 = vmatprep.subr.bf16.mxu0 0
    %1783 = vmatpush1.bf16.msra.mxu0 %v1774
    %1784 = vmatprep.subr.bf16.mxu0 0
    %1785 = vmatpush1.bf16.msra.mxu0 0
    %1786 = vmatprep.subr.bf16.mxu0 0
    %1787 = vmatpush1.bf16.msra.mxu0 0
    %1788 = vmatprep.subr.bf16.mxu0 0
    %1789 = vmatpush1.bf16.msra.mxu0 0
    %1790 = vmatprep.subr.bf16.mxu0 0
    %1791 = vmatpush1.bf16.msra.mxu0 0
    %1792 = vmatprep.subr.bf16.mxu0 0
    %1793 = vmatpush1.bf16.msra.mxu0 0
    %1794 = vmatprep.subr.bf16.mxu0 0
    %1795 = vmatpush1.bf16.msra.mxu0 0
    %1796 = vmatprep.subr.bf16.mxu0 0
    %1797 = vmatpush1.bf16.msra.mxu0 0
    %1798 = vmatprep.subr.bf16.mxu0 0
    %1799 = vmatpush1.bf16.msra.mxu0 0
    %1800 = vmatprep.subr.bf16.mxu0 0
    %1801 = vmatpush1.bf16.msra.mxu0 0
    %1802 = vmatprep.subr.bf16.mxu0 0
    %1803 = vmatpush1.bf16.msra.mxu0 0
    %1804 = vmatprep.subr.bf16.mxu0 0
    %1805 = vmatpush1.bf16.msra.mxu0 0
    %1806 = vmatprep.subr.bf16.mxu0 0
    %1807 = vmatpush1.bf16.msra.mxu0 0
    %1808 = vmatprep.mubr.bf16.mxu0 0
    %1809 = vmatmul.mubr.bf16.gmra.mrb[0].mxu0 %v1771
    %v1810 = vpop.f32.mrb[0].mxu0
    %v1811 = vadd.f32 0.0, %v1810
    %v1812 = vpop.f32.mrb[0].mxu0
    %v1813 = vpop.f32.mrb[0].mxu0
    %v1814 = vpop.f32.mrb[0].mxu0
    %1815 = vdwg.mxu0
    %v1816 = vadd.f32 %v1738, %v1811
    %vm1817 = vcmask 58368
    %1818 = vst.msk [vmem:[#allocation4] sm:$0x3] %vm1817, %v1816
    %1820 = vrot.lane.b32.xlu0 %v1816, 120
    %v1821 = vpop.permute.xlu0 %1820
    %1823 = vst.msk [vmem:[#allocation6] sm:$0x3] %vm1817, %v1821
    // Predicated region
    $region30: #{encoder_forward.1} parent=1 // pred_check
      _
    $region31: #{encoder_forward.1} parent=1 // pred_check_branch
      %1825 = sbr.rel (0) target = $region33
    $region32: #{encoder_forward.1} parent=1 // pred_region
      %s1827 = ssub.s32 32, 32
      %1828 = vsyncadd [#allocation5], %s1827
      %s1830 = sshll.u32 [#allocation4], 4
      %s1831 = int_to_ptr.vmem [resolvable:$true] %s1830
      %1833 = dma.vmem_to_hbm [thread:$0]  %s1831, 32, %s7, [#allocation5]
    $region33: #{encoder_forward.1} parent=1 // pred_fallthru
      _
    // Predicated region
    $region34: #{encoder_forward.1} parent=1 // pred_check
      _
    $region35: #{encoder_forward.1} parent=1 // pred_check_branch
      %1835 = sbr.rel (0) target = $region37
    $region36: #{encoder_forward.1} parent=1 // pred_region
      %s1837 = ssub.s32 32, 32
      %1838 = vsyncadd [#allocation7], %s1837
      %s1840 = sshll.u32 [#allocation6], 4
      %s1841 = int_to_ptr.vmem [resolvable:$true] %s1840
      %1843 = dma.vmem_to_hbm [thread:$0]  %s1841, 32, %s8, [#allocation7]
    $region37: #{encoder_forward.1} parent=1 // pred_fallthru
      _
    // Predicated region
    $region38: #{encoder_forward.1} parent=1 // pred_check
      _
    $region39: #{encoder_forward.1} parent=1 // pred_check_branch
      %1845 = sbr.rel (0) target = $region41
    $region40: #{encoder_forward.1} parent=1 // pred_region
      %1846 = dma.done [#allocation5], 32
    $region41: #{encoder_forward.1} parent=1 // pred_fallthru
      _
    // Predicated region
    $region42: #{encoder_forward.1} parent=1 // pred_check
      _
    $region43: #{encoder_forward.1} parent=1 // pred_check_branch
      %1848 = sbr.rel (0) target = $region45
    $region44: #{encoder_forward.1} parent=1 // pred_region
      %1849 = dma.done [#allocation7], 32
    $region45: #{encoder_forward.1} parent=1 // pred_fallthru
      _
    %1850 = vsyncpa [#allocation5], 1
    %1851 = vsyncpa [#allocation7], 1

</llo_original>
